<compile_context>
chip_gen: v7x
topology: tpu7x:2x2x1
jax: 0.10.0
libtpu: 0.0.40
codegen_flags: <defaults>
</compile_context>

<pallas_src>
import functools

import jax
import jax.numpy as jnp
from jax import lax
from jax.experimental import pallas as pl
from jax.experimental.pallas import tpu as pltpu


def conv_bn_relu_kernel(x_ref, w_ref, shift_ref, o_ref, *, k, stride, th, ow):
    """Grid = (batch, h_tiles); one lane-dense output row-tile per step.

    x_ref:     (Hp, Wp, Cin)   padded NHWC image (bf16), resident across the h-tile axis
    w_ref:     (k*k, Cin, Cp)  bf16 weights with BN scale folded in, Cout zero-padded to Cp
    shift_ref: (1, Cp) f32     folded BN shift  (beta - mean * scale, zero-padded)
    o_ref:     (th, ow, Cp)    output row-tile, lane-dense last dim (unmasked 128-lane vst)
    """
    cin = x_ref.shape[-1]
    cp = o_ref.shape[-1]
    m = th * ow

    t = pl.program_id(1)
    row0 = pl.multiple_of(t * (th * stride), th * stride)
    th_in = (th - 1) * stride + k                      # input rows needed incl. halo
    rows = x_ref[pl.ds(row0, th_in)]                   # (th_in, Wp, Cin) bf16

    # k*k static taps, each an MXU matmul (M = th*ow, K = Cin, N = Cp) accumulated in f32.
    # acc is (m, Cp) f32 = 64 KiB at m = Cp = 128 -> stays in the vreg file (no spills).
    acc = jnp.zeros((m, cp), jnp.float32)
    for kh in range(k):
        for kw in range(k):
            tap = lax.slice(
                rows,
                (kh, kw, 0),
                (kh + (th - 1) * stride + 1, kw + (ow - 1) * stride + 1, cin),
                (stride, stride, 1),
            )                                          # (th, ow, Cin)
            acc = acc + jnp.dot(
                tap.reshape(m, cin),                   # leading-dim merge, no relayout
                w_ref[kh * k + kw],                    # (Cin, Cp) bf16, weights resident
                preferred_element_type=jnp.float32,
            )

    # Fused (folded-BN) shift + ReLU epilogue, f32, fully lane-dense.
    y = jnp.maximum(acc + shift_ref[...], 0.0)
    o_ref[...] = y.reshape(th, ow, cp).astype(o_ref.dtype)


def conv_bn_relu(x_nchw, w_oihw, gamma, beta, running_mean, running_var,
                 *, stride=1, eps=1e-5):
    """Pallas equivalent of convolution(k, inp_dim, out_dim, stride, with_bn=True)."""
    n, cin, h, w = x_nchw.shape
    cout, cin_w, k, k2 = w_oihw.shape
    assert cin == cin_w and k == k2
    pad = (k - 1) // 2
    oh = (h + 2 * pad - k) // stride + 1
    ow = (w + 2 * pad - k) // stride + 1

    cp = ((cout + 127) // 128) * 128                    # lane-dense padded Cout
    th = max(1, min(oh, max(1, 128 // ow)))             # M = th*ow ~ 128 (acc fits vregs)
    n_tiles = -(-oh // th)                              # cdiv
    oh_pad = n_tiles * th

    # Folded inference BN:  conv(x, W)*scale + shift  ==  conv(x, W*scale) + shift.
    scale = (gamma / jnp.sqrt(running_var + eps)).astype(jnp.float32)
    shift = (beta - running_mean * scale).astype(jnp.float32)

    # Layout glue: NCHW -> NHWC, bf16 MXU operands, spatial zero-pad.  Extra bottom rows so
    # the last (possibly partial) row tile stays in bounds; the extra outputs are sliced off.
    hp_needed = (oh_pad - 1) * stride + k
    extra = max(0, hp_needed - (h + 2 * pad))
    x = jnp.transpose(x_nchw, (0, 2, 3, 1)).astype(jnp.bfloat16)
    x = jnp.pad(x, ((0, 0), (pad, pad + extra), (pad, pad), (0, 0)))
    hp, wp = h + 2 * pad + extra, w + 2 * pad

    # Weights: fold BN scale in f32, OIHW -> (k*k, Cin, Cp) bf16, Cout zero-padded to Cp.
    wf = w_oihw * scale[:, None, None, None]
    wk = jnp.transpose(wf, (2, 3, 1, 0)).reshape(k * k, cin, cout)
    wk = jnp.pad(wk, ((0, 0), (0, 0), (0, cp - cout))).astype(jnp.bfloat16)
    shift_p = jnp.pad(shift, (0, cp - cout)).reshape(1, cp)   # padded channels -> relu(0)=0

    kernel = functools.partial(conv_bn_relu_kernel, k=k, stride=stride, th=th, ow=ow)

    out = pl.pallas_call(
        kernel,
        out_shape=jax.ShapeDtypeStruct((n, oh_pad, ow, cp), x_nchw.dtype),
        grid_spec=pltpu.PrefetchScalarGridSpec(
            num_scalar_prefetch=0,
            grid=(n, n_tiles),
            in_specs=[
                # Full padded image per batch element; same block index across the h-tile
                # axis -> fetched once per image and kept resident in VMEM.
                pl.BlockSpec((None, hp, wp, cin), lambda b, t: (b, 0, 0, 0)),
                pl.BlockSpec((k * k, cin, cp), lambda b, t: (0, 0, 0)),
                pl.BlockSpec((1, cp), lambda b, t: (0, 0)),
            ],
            out_specs=pl.BlockSpec((None, th, ow, cp), lambda b, t: (b, t, 0, 0)),
        ),
        compiler_params=pltpu.CompilerParams(
            dimension_semantics=("parallel", "parallel"),
            vmem_limit_bytes=48 * 1024 * 1024,          # > 16/32 MiB defaults, < v7x 64 MiB
        ),
    )(x, wk, shift_p)

    out = out[:, :oh, :, :cout]                         # drop row / lane padding
    return jnp.transpose(out, (0, 3, 1, 2))             # back to NCHW


def _reference(x_nchw, w_oihw, gamma, beta, running_mean, running_var,
               *, stride=1, eps=1e-5):
    # Matches the kernel numerics: BN scale folded into bf16 weights, f32 accumulation,
    # f32 shift + ReLU epilogue.
    k = w_oihw.shape[-1]
    pad = (k - 1) // 2
    scale = gamma / jnp.sqrt(running_var + eps)
    shift = beta - running_mean * scale
    wf = (w_oihw * scale[:, None, None, None]).astype(jnp.bfloat16)
    conv = lax.conv_general_dilated(
        x_nchw.astype(jnp.bfloat16), wf,
        window_strides=(stride, stride), padding=((pad, pad), (pad, pad)),
        dimension_numbers=("NCHW", "OIHW", "NCHW"),
        preferred_element_type=jnp.float32,
    )
    bn = conv + shift[None, :, None, None]
    return jnp.maximum(bn, 0.0).astype(x_nchw.dtype)


if __name__ == "__main__":
    # Module config: convolution(k=3, inp_dim=4, out_dim=8, stride=1, with_bn=True)
    N, Cin, H, W = 2, 4, 16, 16
    Cout, K, stride = 8, 3, 1

    key = jax.random.PRNGKey(0)
    kx, kw, kg, kb, km, kv = jax.random.split(key, 6)

    x = jax.random.normal(kx, (N, Cin, H, W), dtype=jnp.float32)
    # Conv2d weight (bias=False since with_bn=True), kaiming-ish scale.
    w = jax.random.normal(kw, (Cout, Cin, K, K), dtype=jnp.float32) * (
        1.0 / jnp.sqrt(Cin * K * K)
    )
    # Deterministic BN parameters / running stats (inference mode).
    gamma = 1.0 + 0.1 * jax.random.normal(kg, (Cout,), dtype=jnp.float32)
    beta = 0.1 * jax.random.normal(kb, (Cout,), dtype=jnp.float32)
    running_mean = 0.1 * jax.random.normal(km, (Cout,), dtype=jnp.float32)
    running_var = 1.0 + 0.1 * jax.random.uniform(kv, (Cout,), dtype=jnp.float32)

    out = conv_bn_relu(x, w, gamma, beta, running_mean, running_var, stride=stride)
    out = jax.block_until_ready(out)

    ref = _reference(x, w, gamma, beta, running_mean, running_var, stride=stride)
    assert out.shape == (N, Cout, H, W), out.shape
    err = float(jnp.max(jnp.abs(out - ref)))
    assert jnp.allclose(out, ref, atol=1e-2, rtol=1e-2), err

    print("KERNEL_OK")
</pallas_src>

<mosaic_0001>
module attributes {stable_mosaic.version = 11 : i64} {
  func.func @conv_bn_relu_kernel(%arg0: i32, %arg1: i32, %arg2: memref<1x18x18x4xbf16, #tpu.memory_space<vmem>>, %arg3: memref<9x4x128xbf16, #tpu.memory_space<vmem>>, %arg4: memref<1x128xf32, #tpu.memory_space<vmem>>, %arg5: memref<1x8x16x128xf32, #tpu.memory_space<vmem>>) attributes {dimension_semantics = [#tpu.dimension_semantics<parallel>, #tpu.dimension_semantics<parallel>], iteration_bounds = array<i64: 2, 2>, scalar_prefetch = 0 : i64, scratch_operands = 0 : i64, tpu.core_type = #tpu.core_type<tc>, window_params = [{transform_indices = @transform_0, window_bounds = array<i64: 1, 18, 18, 4>}, {pipeline_mode = #tpu.pipeline_mode<synchronous>, transform_indices = @transform_1, window_bounds = array<i64: 9, 4, 128>}, {pipeline_mode = #tpu.pipeline_mode<synchronous>, transform_indices = @transform_2, window_bounds = array<i64: 1, 128>}, {transform_indices = @transform_3, window_bounds = array<i64: 1, 8, 16, 128>}]} {
    %c8_i32 = arith.constant 8 : i32
    %0 = arith.muli %arg1, %c8_i32 : i32
    %1 = tpu.assume_multiple %0, 8 : i32
    %c0 = arith.constant 0 : index
    %2 = arith.index_cast %1 : i32 to index
    %c0_0 = arith.constant 0 : index
    %c0_1 = arith.constant 0 : index
    %3 = vector.load %arg2[%c0, %2, %c0_0, %c0_1] : memref<1x18x18x4xbf16, #tpu.memory_space<vmem>>, vector<1x10x18x4xbf16>
    %4 = vector.shape_cast %3 : vector<1x10x18x4xbf16> to vector<10x18x4xbf16>
    %cst = arith.constant 0.000000e+00 : f32
    %5 = vector.broadcast %cst : f32 to vector<128x128xf32>
    %6 = vector.extract_strided_slice %4 {offsets = [0, 0, 0], sizes = [8, 16, 4], strides = [1, 1, 1]} : vector<10x18x4xbf16> to vector<8x16x4xbf16>
    %7 = vector.shape_cast %6 : vector<8x16x4xbf16> to vector<128x4xbf16>
    %c0_2 = arith.constant 0 : index
    %c0_3 = arith.constant 0 : index
    %c0_4 = arith.constant 0 : index
    %8 = vector.load %arg3[%c0_2, %c0_3, %c0_4] : memref<9x4x128xbf16, #tpu.memory_space<vmem>>, vector<1x4x128xbf16>
    %9 = vector.shape_cast %8 : vector<1x4x128xbf16> to vector<4x128xbf16>
    %cst_5 = arith.constant dense<0.000000e+00> : vector<128x128xf32>
    %10 = tpu.matmul %7, %9, %cst_5 {dimension_numbers = #tpu.dot_dimension_numbers<[1], [0], [0], [1], [0, 0, 1, 1], [], []>} : vector<128x4xbf16>, vector<4x128xbf16>, vector<128x128xf32> -> vector<128x128xf32>
    %11 = arith.addf %5, %10 : vector<128x128xf32>
    %12 = vector.extract_strided_slice %4 {offsets = [0, 1, 0], sizes = [8, 16, 4], strides = [1, 1, 1]} : vector<10x18x4xbf16> to vector<8x16x4xbf16>
    %13 = vector.shape_cast %12 : vector<8x16x4xbf16> to vector<128x4xbf16>
    %c1 = arith.constant 1 : index
    %c0_6 = arith.constant 0 : index
    %c0_7 = arith.constant 0 : index
    %14 = vector.load %arg3[%c1, %c0_6, %c0_7] : memref<9x4x128xbf16, #tpu.memory_space<vmem>>, vector<1x4x128xbf16>
    %15 = vector.shape_cast %14 : vector<1x4x128xbf16> to vector<4x128xbf16>
    %cst_8 = arith.constant dense<0.000000e+00> : vector<128x128xf32>
    %16 = tpu.matmul %13, %15, %cst_8 {dimension_numbers = #tpu.dot_dimension_numbers<[1], [0], [0], [1], [0, 0, 1, 1], [], []>} : vector<128x4xbf16>, vector<4x128xbf16>, vector<128x128xf32> -> vector<128x128xf32>
    %17 = arith.addf %11, %16 : vector<128x128xf32>
    %18 = vector.extract_strided_slice %4 {offsets = [0, 2, 0], sizes = [8, 16, 4], strides = [1, 1, 1]} : vector<10x18x4xbf16> to vector<8x16x4xbf16>
    %19 = vector.shape_cast %18 : vector<8x16x4xbf16> to vector<128x4xbf16>
    %c2 = arith.constant 2 : index
    %c0_9 = arith.constant 0 : index
    %c0_10 = arith.constant 0 : index
    %20 = vector.load %arg3[%c2, %c0_9, %c0_10] : memref<9x4x128xbf16, #tpu.memory_space<vmem>>, vector<1x4x128xbf16>
    %21 = vector.shape_cast %20 : vector<1x4x128xbf16> to vector<4x128xbf16>
    %cst_11 = arith.constant dense<0.000000e+00> : vector<128x128xf32>
    %22 = tpu.matmul %19, %21, %cst_11 {dimension_numbers = #tpu.dot_dimension_numbers<[1], [0], [0], [1], [0, 0, 1, 1], [], []>} : vector<128x4xbf16>, vector<4x128xbf16>, vector<128x128xf32> -> vector<128x128xf32>
    %23 = arith.addf %17, %22 : vector<128x128xf32>
    %24 = vector.extract_strided_slice %4 {offsets = [1, 0, 0], sizes = [8, 16, 4], strides = [1, 1, 1]} : vector<10x18x4xbf16> to vector<8x16x4xbf16>
    %25 = vector.shape_cast %24 : vector<8x16x4xbf16> to vector<128x4xbf16>
    %c3 = arith.constant 3 : index
    %c0_12 = arith.constant 0 : index
    %c0_13 = arith.constant 0 : index
    %26 = vector.load %arg3[%c3, %c0_12, %c0_13] : memref<9x4x128xbf16, #tpu.memory_space<vmem>>, vector<1x4x128xbf16>
    %27 = vector.shape_cast %26 : vector<1x4x128xbf16> to vector<4x128xbf16>
    %cst_14 = arith.constant dense<0.000000e+00> : vector<128x128xf32>
    %28 = tpu.matmul %25, %27, %cst_14 {dimension_numbers = #tpu.dot_dimension_numbers<[1], [0], [0], [1], [0, 0, 1, 1], [], []>} : vector<128x4xbf16>, vector<4x128xbf16>, vector<128x128xf32> -> vector<128x128xf32>
    %29 = arith.addf %23, %28 : vector<128x128xf32>
    %30 = vector.extract_strided_slice %4 {offsets = [1, 1, 0], sizes = [8, 16, 4], strides = [1, 1, 1]} : vector<10x18x4xbf16> to vector<8x16x4xbf16>
    %31 = vector.shape_cast %30 : vector<8x16x4xbf16> to vector<128x4xbf16>
    %c4 = arith.constant 4 : index
    %c0_15 = arith.constant 0 : index
    %c0_16 = arith.constant 0 : index
    %32 = vector.load %arg3[%c4, %c0_15, %c0_16] : memref<9x4x128xbf16, #tpu.memory_space<vmem>>, vector<1x4x128xbf16>
    %33 = vector.shape_cast %32 : vector<1x4x128xbf16> to vector<4x128xbf16>
    %cst_17 = arith.constant dense<0.000000e+00> : vector<128x128xf32>
    %34 = tpu.matmul %31, %33, %cst_17 {dimension_numbers = #tpu.dot_dimension_numbers<[1], [0], [0], [1], [0, 0, 1, 1], [], []>} : vector<128x4xbf16>, vector<4x128xbf16>, vector<128x128xf32> -> vector<128x128xf32>
    %35 = arith.addf %29, %34 : vector<128x128xf32>
    %36 = vector.extract_strided_slice %4 {offsets = [1, 2, 0], sizes = [8, 16, 4], strides = [1, 1, 1]} : vector<10x18x4xbf16> to vector<8x16x4xbf16>
    %37 = vector.shape_cast %36 : vector<8x16x4xbf16> to vector<128x4xbf16>
    %c5 = arith.constant 5 : index
    %c0_18 = arith.constant 0 : index
    %c0_19 = arith.constant 0 : index
    %38 = vector.load %arg3[%c5, %c0_18, %c0_19] : memref<9x4x128xbf16, #tpu.memory_space<vmem>>, vector<1x4x128xbf16>
    %39 = vector.shape_cast %38 : vector<1x4x128xbf16> to vector<4x128xbf16>
    %cst_20 = arith.constant dense<0.000000e+00> : vector<128x128xf32>
    %40 = tpu.matmul %37, %39, %cst_20 {dimension_numbers = #tpu.dot_dimension_numbers<[1], [0], [0], [1], [0, 0, 1, 1], [], []>} : vector<128x4xbf16>, vector<4x128xbf16>, vector<128x128xf32> -> vector<128x128xf32>
    %41 = arith.addf %35, %40 : vector<128x128xf32>
    %42 = vector.extract_strided_slice %4 {offsets = [2, 0, 0], sizes = [8, 16, 4], strides = [1, 1, 1]} : vector<10x18x4xbf16> to vector<8x16x4xbf16>
    %43 = vector.shape_cast %42 : vector<8x16x4xbf16> to vector<128x4xbf16>
    %c6 = arith.constant 6 : index
    %c0_21 = arith.constant 0 : index
    %c0_22 = arith.constant 0 : index
    %44 = vector.load %arg3[%c6, %c0_21, %c0_22] : memref<9x4x128xbf16, #tpu.memory_space<vmem>>, vector<1x4x128xbf16>
    %45 = vector.shape_cast %44 : vector<1x4x128xbf16> to vector<4x128xbf16>
    %cst_23 = arith.constant dense<0.000000e+00> : vector<128x128xf32>
    %46 = tpu.matmul %43, %45, %cst_23 {dimension_numbers = #tpu.dot_dimension_numbers<[1], [0], [0], [1], [0, 0, 1, 1], [], []>} : vector<128x4xbf16>, vector<4x128xbf16>, vector<128x128xf32> -> vector<128x128xf32>
    %47 = arith.addf %41, %46 : vector<128x128xf32>
    %48 = vector.extract_strided_slice %4 {offsets = [2, 1, 0], sizes = [8, 16, 4], strides = [1, 1, 1]} : vector<10x18x4xbf16> to vector<8x16x4xbf16>
    %49 = vector.shape_cast %48 : vector<8x16x4xbf16> to vector<128x4xbf16>
    %c7 = arith.constant 7 : index
    %c0_24 = arith.constant 0 : index
    %c0_25 = arith.constant 0 : index
    %50 = vector.load %arg3[%c7, %c0_24, %c0_25] : memref<9x4x128xbf16, #tpu.memory_space<vmem>>, vector<1x4x128xbf16>
    %51 = vector.shape_cast %50 : vector<1x4x128xbf16> to vector<4x128xbf16>
    %cst_26 = arith.constant dense<0.000000e+00> : vector<128x128xf32>
    %52 = tpu.matmul %49, %51, %cst_26 {dimension_numbers = #tpu.dot_dimension_numbers<[1], [0], [0], [1], [0, 0, 1, 1], [], []>} : vector<128x4xbf16>, vector<4x128xbf16>, vector<128x128xf32> -> vector<128x128xf32>
    %53 = arith.addf %47, %52 : vector<128x128xf32>
    %54 = vector.extract_strided_slice %4 {offsets = [2, 2, 0], sizes = [8, 16, 4], strides = [1, 1, 1]} : vector<10x18x4xbf16> to vector<8x16x4xbf16>
    %55 = vector.shape_cast %54 : vector<8x16x4xbf16> to vector<128x4xbf16>
    %c8 = arith.constant 8 : index
    %c0_27 = arith.constant 0 : index
    %c0_28 = arith.constant 0 : index
    %56 = vector.load %arg3[%c8, %c0_27, %c0_28] : memref<9x4x128xbf16, #tpu.memory_space<vmem>>, vector<1x4x128xbf16>
    %57 = vector.shape_cast %56 : vector<1x4x128xbf16> to vector<4x128xbf16>
    %cst_29 = arith.constant dense<0.000000e+00> : vector<128x128xf32>
    %58 = tpu.matmul %55, %57, %cst_29 {dimension_numbers = #tpu.dot_dimension_numbers<[1], [0], [0], [1], [0, 0, 1, 1], [], []>} : vector<128x4xbf16>, vector<4x128xbf16>, vector<128x128xf32> -> vector<128x128xf32>
    %59 = arith.addf %53, %58 : vector<128x128xf32>
    %c0_30 = arith.constant 0 : index
    %c0_31 = arith.constant 0 : index
    %60 = vector.load %arg4[%c0_30, %c0_31] : memref<1x128xf32, #tpu.memory_space<vmem>>, vector<1x128xf32>
    %61 = vector.broadcast %60 : vector<1x128xf32> to vector<128x128xf32>
    %62 = arith.addf %59, %61 : vector<128x128xf32>
    %cst_32 = arith.constant 0.000000e+00 : f32
    %63 = vector.broadcast %cst_32 : f32 to vector<128x128xf32>
    %64 = arith.maximumf %62, %63 : vector<128x128xf32>
    %65 = vector.shape_cast %64 : vector<128x128xf32> to vector<8x16x128xf32>
    %c0_33 = arith.constant 0 : index
    %c0_34 = arith.constant 0 : index
    %c0_35 = arith.constant 0 : index
    %c0_36 = arith.constant 0 : index
    %66 = vector.load %arg5[%c0_33, %c0_34, %c0_35, %c0_36] : memref<1x8x16x128xf32, #tpu.memory_space<vmem>>, vector<1x8x16x128xf32>
    %67 = vector.shape_cast %66 : vector<1x8x16x128xf32> to vector<8x16x128xf32>
    %68 = vector.shape_cast %65 : vector<8x16x128xf32> to vector<1x8x16x128xf32>
    tpu.vector_store %arg5[%c0_33, %c0_34, %c0_35, %c0_36], %68 {strides = array<i32>} : memref<1x8x16x128xf32, #tpu.memory_space<vmem>>, vector<1x8x16x128xf32>,
    return
  }
  func.func @transform_0(%arg0: i32, %arg1: i32) -> (i32, i32, i32, i32) {
    %c0_i32 = arith.constant 0 : i32
    %c0_i32_0 = arith.constant 0 : i32
    %c0_i32_1 = arith.constant 0 : i32
    %c0_i32_2 = arith.constant 0 : i32
    return %arg0, %c0_i32, %c0_i32_0, %c0_i32_1 : i32, i32, i32, i32
  }
  func.func @transform_1(%arg0: i32, %arg1: i32) -> (i32, i32, i32) {
    %c0_i32 = arith.constant 0 : i32
    %c0_i32_0 = arith.constant 0 : i32
    %c0_i32_1 = arith.constant 0 : i32
    %c0_i32_2 = arith.constant 0 : i32
    return %c0_i32, %c0_i32_0, %c0_i32_1 : i32, i32, i32
  }
  func.func @transform_2(%arg0: i32, %arg1: i32) -> (i32, i32) {
    %c0_i32 = arith.constant 0 : i32
    %c0_i32_0 = arith.constant 0 : i32
    %c0_i32_1 = arith.constant 0 : i32
    return %c0_i32, %c0_i32_0 : i32, i32
  }
  func.func @transform_3(%arg0: i32, %arg1: i32) -> (i32, i32, i32, i32) {
    %c0_i32 = arith.constant 0 : i32
    %c0_i32_0 = arith.constant 0 : i32
    %c0_i32_1 = arith.constant 0 : i32
    return %arg0, %arg1, %c0_i32, %c0_i32_0 : i32, i32, i32, i32
  }
}

</mosaic_0001>

<llo_original>
// kernel: tpu_custom_call.1
$region0: #{tpu_custom_call.1}
  #allocation0 [shape = 'u32[]', space=smem, size = 0x4, offset = 0x4, fixed_abs, tag = 'smem constant byte address 0x4 - core index']
  #allocation1 [shape = 'u32[144,128]{1,0:T(1,128)}', space=vmem, size = 0x12000, scoped, tag = 'internal scratch']
  %s0 = inlined_call_operand.vmem [shape: bf16[2,18,18,4], index: 0, kind: input, shape index: {}]
  %s1 = inlined_call_operand.vmem [shape: bf16[9,4,128], index: 1, kind: input, shape index: {}]
  %s2 = inlined_call_operand.vmem [shape: f32[1,128], index: 2, kind: input, shape index: {}]
  %s3 = inlined_call_operand.hbm [shape: f32[2,16,16,128], index: 3, kind: output, shape index: {}]
  %s4 = sld [smem:[#allocation0]]
  $region45: #{tpu_custom_call.1} parent=0
    _
  %s6 = ssub.s32 1, %s4
  %s7 = scalar_select 0, %s6, %s4
  $region1: #{tpu_custom_call.1} parent=0
    #allocation2 [shape = 'u8[131072]{0}', space=vmem, size = 0x20000, scoped, tag = 'output window, operand 0']
    #allocation3 [shape = 's32[2]{0}', space=sflag, size = 0x8, scoped, tag = 'scoped memory for tpu_custom_call.1']
    %8 = vsyncpa [#allocation3], 0
    %s9 = scalar_lea.sflag [#allocation3], 1
    %10 = vsyncpa %s9, 0
    loop: start=0, step=1, limit=6
    $region2: #{tpu_custom_call.1} parent=1 // loop_pre_header
      _
    $region3: #{tpu_custom_call.1} parent=1 // loop_header
      %s12 = sphi 0, %s16
      %p13 = scmp.ge.s32.totalorder %s12, 6
      %s19 = sphi 0, %s31
      %s20 = sphi 0, %s27
      %s21 = sphi 0, %s19
      %s22 = sphi 0, %s20
      %s23 = sphi 0, %s21
      %s24 = sphi 0, %s22
      %s34 = sphi 0, %s36
      %s37 = sphi 0, %s34
      %s38 = sphi 0, %s37
      %s54 = sphi 0, %s38
      %s58 = sphi 0, %s58
      %s60 = sphi 0, %s58
      %s61 = sphi 0, %s60
      %s75 = sphi 0, %s61
      %s79 = sphi 0, %s79
      %s81 = sphi 0, %s79
      %s82 = sphi 0, %s81
      %s96 = sphi 0, %s82
      %s104 = sphi 0, %s106
      %s107 = sphi 0, %s104
      %s108 = sphi 0, %s107
      %s124 = sphi 0, %s108
    $region4: #{tpu_custom_call.1} parent=1 // loop_header_branch
      %15 = sbr.rel (%p13) target = $region8
    $region5: #{tpu_custom_call.1} parent=1 // loop_body
      %s17 = ssub.s32 %s12, 1
      %s18 = ssub.s32 %s12, 2
      %s25 = sadd.s32 1, %s20
      %p26 = scmp.ge.s32.totalorder %s25, 2
      %s27 = scalar_select %p26, 0, %s25
      %s28 = sadd.s32 1, %s19
      %s29 = scalar_select %p26, %s28, %s19
      %p30 = scmp.ge.s32.totalorder %s29, 2
      %s31 = scalar_select %p30, 0, %s29
      %s32 = ssub.s32 %s19, %s31
      %p33 = scmp.eq.s32.totalorder %s32, 0
      %s35 = sadd.s32 %s34, 1
      %s36 = scalar_select %p33, %s34, %s35
      %p39 = pneg %p33
      %p40 = scmp.eq.s32.totalorder %s12, 3
      %p41 = por %p39, %p40
      %p42 = scmp.ne.s32.totalorder %s34, %s37
      %p43 = scmp.eq.s32.totalorder %s12, 0
      %p44 = por %p42, %p43
      %p45 = scmp.ne.s32.totalorder %s34, %s37
      %p46 = scmp.eq.s32.totalorder %s17, 3
      %p47 = por %p45, %p46
      %p48 = scmp.ne.s32.totalorder %s37, %s38
      %p49 = scmp.eq.s32.totalorder %s17, 0
      %p50 = por %p48, %p49
      %p51 = scmp.ne.s32.totalorder %s37, %s38
      %p52 = scmp.eq.s32.totalorder %s18, 3
      %p53 = por %p51, %p52
      %p55 = scmp.ne.s32.totalorder %s38, %s54
      %p56 = scmp.eq.s32.totalorder %s18, 0
      %p57 = por %p55, %p56
      %s59 = sadd.s32 %s58, 1
      %p62 = scmp.eq.s32.totalorder %s12, 3
      %p63 = scmp.ne.s32.totalorder %s58, %s60
      %p64 = scmp.eq.s32.totalorder %s12, 0
      %p65 = por %p63, %p64
      %p66 = scmp.ne.s32.totalorder %s58, %s60
      %p67 = scmp.eq.s32.totalorder %s17, 3
      %p68 = por %p66, %p67
      %p69 = scmp.ne.s32.totalorder %s60, %s61
      %p70 = scmp.eq.s32.totalorder %s17, 0
      %p71 = por %p69, %p70
      %p72 = scmp.ne.s32.totalorder %s60, %s61
      %p73 = scmp.eq.s32.totalorder %s18, 3
      %p74 = por %p72, %p73
      %p76 = scmp.ne.s32.totalorder %s61, %s75
      %p77 = scmp.eq.s32.totalorder %s18, 0
      %p78 = por %p76, %p77
      %s80 = sadd.s32 %s79, 1
      %p83 = scmp.eq.s32.totalorder %s12, 3
      %p84 = scmp.ne.s32.totalorder %s79, %s81
      %p85 = scmp.eq.s32.totalorder %s12, 0
      %p86 = por %p84, %p85
      %p87 = scmp.ne.s32.totalorder %s79, %s81
      %p88 = scmp.eq.s32.totalorder %s17, 3
      %p89 = por %p87, %p88
      %p90 = scmp.ne.s32.totalorder %s81, %s82
      %p91 = scmp.eq.s32.totalorder %s17, 0
      %p92 = por %p90, %p91
      %p93 = scmp.ne.s32.totalorder %s81, %s82
      %p94 = scmp.eq.s32.totalorder %s18, 3
      %p95 = por %p93, %p94
      %p97 = scmp.ne.s32.totalorder %s82, %s96
      %p98 = scmp.eq.s32.totalorder %s18, 0
      %p99 = por %p97, %p98
      %s100 = ssub.s32 %s19, %s31
      %s101 = ssub.s32 %s20, %s27
      %s102 = sor.u32 %s100, %s101
      %p103 = scmp.eq.s32.totalorder %s102, 0
      %s105 = sadd.s32 %s104, 1
      %s106 = scalar_select %p103, %s104, %s105
      %p109 = pneg %p103
      %p110 = scmp.eq.s32.totalorder %s12, 3
      %p111 = por %p109, %p110
      %p112 = scmp.ne.s32.totalorder %s104, %s107
      %p113 = scmp.eq.s32.totalorder %s12, 0
      %p114 = por %p112, %p113
      %p115 = scmp.ne.s32.totalorder %s104, %s107
      %p116 = scmp.eq.s32.totalorder %s17, 3
      %p117 = por %p115, %p116
      %p118 = scmp.ne.s32.totalorder %s107, %s108
      %p119 = scmp.eq.s32.totalorder %s17, 0
      %p120 = por %p118, %p119
      %p121 = scmp.ne.s32.totalorder %s107, %s108
      %p122 = scmp.eq.s32.totalorder %s18, 3
      %p123 = por %p121, %p122
      %p125 = scmp.ne.s32.totalorder %s108, %s124
      %p126 = scmp.eq.s32.totalorder %s18, 0
      %p127 = por %p125, %p126
      %p128 = scmp.le.s32.totalorder 1, %s12
      %p129 = scmp.lt.s32.totalorder %s12, 5
      %p130 = pnand %p128, %p129
      %p131 = pneg %p130
      // Predicated region
      $region9: #{tpu_custom_call.1} parent=5 // pred_check
        _
      $region10: #{tpu_custom_call.1} parent=5 // pred_check_branch
        %133 = sbr.rel (%p130) target = $region12
      $region11: #{tpu_custom_call.1} parent=5 // pred_region
        %s134 = ssub.s32 %s12, 1
        // Predicated region
        $region13: #{tpu_custom_call.1} parent=11 // pred_check
          %p135 = pneg %p71
        $region14: #{tpu_custom_call.1} parent=11 // pred_check_branch
          %137 = sbr.rel (%p135) target = $region16
        $region15: #{tpu_custom_call.1} parent=11 // pred_region
          _
        $region16: #{tpu_custom_call.1} parent=11 // pred_fallthru
          _
        // Predicated region
        $region17: #{tpu_custom_call.1} parent=11 // pred_check
          %p138 = pneg %p92
        $region18: #{tpu_custom_call.1} parent=11 // pred_check_branch
          %140 = sbr.rel (%p138) target = $region20
        $region19: #{tpu_custom_call.1} parent=11 // pred_region
          _
        $region20: #{tpu_custom_call.1} parent=11 // pred_fallthru
          _
      $region12: #{tpu_custom_call.1} parent=5 // pred_fallthru
        _
      %p141 = scmp.lt.s32.totalorder %s12, 4
      // Predicated region
      $region21: #{tpu_custom_call.1} parent=5 // pred_check
        %p142 = pneg %p141
      $region22: #{tpu_custom_call.1} parent=5 // pred_check_branch
        %144 = sbr.rel (%p142) target = $region24
      $region23: #{tpu_custom_call.1} parent=5 // pred_region
        // Predicated region
        $region25: #{tpu_custom_call.1} parent=23 // pred_check
          %p145 = pneg %p44
        $region26: #{tpu_custom_call.1} parent=23 // pred_check_branch
          %147 = sbr.rel (%p145) target = $region28
        $region27: #{tpu_custom_call.1} parent=23 // pred_region
          %p148 = scmp.lt.s32.totalorder %s19, 1
          %s149 = scalar_select %p148, %s19, 1
          %s150 = smul.addr %s149, 54
          %s151 = smul.addr %s150, 4
          %s152 = scalar_lea.vmem %s0, %s151
        $region28: #{tpu_custom_call.1} parent=23 // pred_fallthru
          _
      $region24: #{tpu_custom_call.1} parent=5 // pred_fallthru
        _
      %p153 = scmp.le.s32.totalorder 1, %s12
      %p154 = scmp.lt.s32.totalorder %s12, 5
      %p155 = pnand %p153, %p154
      %p156 = pneg %p155
      // Predicated region
      $region29: #{tpu_custom_call.1} parent=5 // pred_check
        _
      $region30: #{tpu_custom_call.1} parent=5 // pred_check_branch
        %158 = sbr.rel (%p155) target = $region32
      $region31: #{tpu_custom_call.1} parent=5 // pred_region
        %s159 = ssub.s32 %s12, 1
        %p160 = scmp.lt.s32.totalorder %s21, 1
        %s161 = scalar_select %p160, %s21, 1
        %s162 = smul.addr %s161, 54
        %s163 = smul.addr %s162, 4
        %s164 = scalar_lea.vmem %s0, %s163
        %p165 = pneg %p50
        %p166 = pneg %p47
        %p167 = pneg %p71
        %p168 = pneg %p68
        %p169 = pneg %p92
        %p170 = pneg %p89
        %p171 = pneg %p120
        %p172 = pneg %p117
        %s173 = sand.u32 %s107, 1
        %s174 = scalar_lea.sflag [#allocation3], %s173
        %s175 = sand.u32 %s107, 1
        %s176 = smul.addr %s175, 128
        %s177 = scalar_lea.vmem [#allocation2], %s176
        %p178 = scmp.lt.s32.totalorder %s21, 1
        %s179 = scalar_select %p178, %s21, 1
        %s180 = smul.addr %s179, 54
        %s181 = smul.addr %s180, 4
        %s182 = scalar_lea.vmem %s0, %s181
        %s183 = smul.u32 8, %s22
        %s185 = smul.u32 %s22, 8
        %s186 = smul.u32 %s185, 3
        %s187 = smul.addr %s186, 4
        %s188 = scalar_lea.vmem %s182, %s187
        %v189 = vld [vmem:[%s188] sm:$0xf]
        %v190 = vld [vmem:[%s188 + $0x4] sm:$0xf]
        %v191 = vld [vmem:[%s188 + $0x8] sm:$0x1]
        %v192 = vld [vmem:[%s188 + $0xc] sm:$0xf]
        %v193 = vld [vmem:[%s188 + $0x10] sm:$0xf]
        %v194 = vld [vmem:[%s188 + $0x14] sm:$0x1]
        %v195 = vld [vmem:[%s188 + $0x18] sm:$0xf]
        %v196 = vld [vmem:[%s188 + $0x1c] sm:$0xf]
        %v197 = vld [vmem:[%s188 + $0x20] sm:$0x1]
        %v198 = vld [vmem:[%s188 + $0x24] sm:$0xf]
        %v199 = vld [vmem:[%s188 + $0x28] sm:$0xf]
        %v200 = vld [vmem:[%s188 + $0x2c] sm:$0x1]
        %v201 = vld [vmem:[%s188 + $0x30] sm:$0xf]
        %v202 = vld [vmem:[%s188 + $0x34] sm:$0xf]
        %v203 = vld [vmem:[%s188 + $0x38] sm:$0x1]
        %v204 = vld [vmem:[%s188 + $0x3c] sm:$0xf]
        %v205 = vld [vmem:[%s188 + $0x40] sm:$0xf]
        %v206 = vld [vmem:[%s188 + $0x44] sm:$0x1]
        %v207 = vld [vmem:[%s188 + $0x48] sm:$0xf]
        %v208 = vld [vmem:[%s188 + $0x4c] sm:$0xf]
        %v209 = vld [vmem:[%s188 + $0x50] sm:$0x1]
        %v210 = vld [vmem:[%s188 + $0x54] sm:$0xf]
        %v211 = vld [vmem:[%s188 + $0x58] sm:$0xf]
        %v212 = vld [vmem:[%s188 + $0x5c] sm:$0x1]
        %v213 = vld [vmem:[%s188 + $0x60] sm:$0xf]
        %v214 = vld [vmem:[%s188 + $0x64] sm:$0xf]
        %v215 = vld [vmem:[%s188 + $0x68] sm:$0x1]
        %v216 = vld [vmem:[%s188 + $0x6c] sm:$0xf]
        %v217 = vld [vmem:[%s188 + $0x70] sm:$0xf]
        %v218 = vld [vmem:[%s188 + $0x74] sm:$0x1]
        %v219 = vld [vmem:[%s1] sm:$0x3]
        %vm220 = vsmask.f32 3328
        %vm221 = vsmask.f32 7440
        %vm222 = vmor %vm220, %vm221
        %v224 = vshrl.u32 %v189, 16
        %v226 = vrot.slane %v224, 4
        %v227 = vshll.u32 %v189, 16
        %v229 = vrot.slane %v227, 5
        %v230 = vor.u32 %v226, %v229
        %v231 = vrot.slane %v230, 4
        %v233 = vshll.u32 %v190, 16
        %v235 = vrot.slane %v233, 5
        %v236 = vsel %vm222, %v231, %v235
        %v237 = vshrl.u32 %v190, 16
        %v239 = vrot.slane %v237, 4
        %v240 = vor.u32 %v239, %v235
        %v241 = vrot.slane %v240, 4
        %v243 = vshll.u32 %v191, 16
        %v245 = vrot.slane %v243, 5
        %v246 = vsel %vm222, %v241, %v245
        %v248 = vshrl.u32 %v192, 16
        %v250 = vrot.slane %v248, 4
        %v251 = vshll.u32 %v192, 16
        %v253 = vrot.slane %v251, 5
        %v254 = vor.u32 %v250, %v253
        %v255 = vrot.slane %v254, 4
        %v257 = vshll.u32 %v193, 16
        %v259 = vrot.slane %v257, 5
        %v260 = vsel %vm222, %v255, %v259
        %v261 = vshrl.u32 %v193, 16
        %v263 = vrot.slane %v261, 4
        %v264 = vor.u32 %v263, %v259
        %v265 = vrot.slane %v264, 4
        %v267 = vshll.u32 %v194, 16
        %v269 = vrot.slane %v267, 5
        %v270 = vsel %vm222, %v265, %v269
        %v272 = vshrl.u32 %v195, 16
        %v274 = vrot.slane %v272, 4
        %v275 = vshll.u32 %v195, 16
        %v277 = vrot.slane %v275, 5
        %v278 = vor.u32 %v274, %v277
        %v279 = vrot.slane %v278, 4
        %v281 = vshll.u32 %v196, 16
        %v283 = vrot.slane %v281, 5
        %v284 = vsel %vm222, %v279, %v283
        %v285 = vshrl.u32 %v196, 16
        %v287 = vrot.slane %v285, 4
        %v288 = vor.u32 %v287, %v283
        %v289 = vrot.slane %v288, 4
        %v291 = vshll.u32 %v197, 16
        %v293 = vrot.slane %v291, 5
        %v294 = vsel %vm222, %v289, %v293
        %v296 = vshrl.u32 %v198, 16
        %v298 = vrot.slane %v296, 4
        %v299 = vshll.u32 %v198, 16
        %v301 = vrot.slane %v299, 5
        %v302 = vor.u32 %v298, %v301
        %v303 = vrot.slane %v302, 4
        %v305 = vshll.u32 %v199, 16
        %v307 = vrot.slane %v305, 5
        %v308 = vsel %vm222, %v303, %v307
        %v309 = vshrl.u32 %v199, 16
        %v311 = vrot.slane %v309, 4
        %v312 = vor.u32 %v311, %v307
        %v313 = vrot.slane %v312, 4
        %v315 = vshll.u32 %v200, 16
        %v317 = vrot.slane %v315, 5
        %v318 = vsel %vm222, %v313, %v317
        %v320 = vshrl.u32 %v201, 16
        %v322 = vrot.slane %v320, 4
        %v323 = vshll.u32 %v201, 16
        %v325 = vrot.slane %v323, 5
        %v326 = vor.u32 %v322, %v325
        %v327 = vrot.slane %v326, 4
        %v329 = vshll.u32 %v202, 16
        %v331 = vrot.slane %v329, 5
        %v332 = vsel %vm222, %v327, %v331
        %v333 = vshrl.u32 %v202, 16
        %v335 = vrot.slane %v333, 4
        %v336 = vor.u32 %v335, %v331
        %v337 = vrot.slane %v336, 4
        %v339 = vshll.u32 %v203, 16
        %v341 = vrot.slane %v339, 5
        %v342 = vsel %vm222, %v337, %v341
        %v344 = vshrl.u32 %v204, 16
        %v346 = vrot.slane %v344, 4
        %v347 = vshll.u32 %v204, 16
        %v349 = vrot.slane %v347, 5
        %v350 = vor.u32 %v346, %v349
        %v351 = vrot.slane %v350, 4
        %v353 = vshll.u32 %v205, 16
        %v355 = vrot.slane %v353, 5
        %v356 = vsel %vm222, %v351, %v355
        %v357 = vshrl.u32 %v205, 16
        %v359 = vrot.slane %v357, 4
        %v360 = vor.u32 %v359, %v355
        %v361 = vrot.slane %v360, 4
        %v363 = vshll.u32 %v206, 16
        %v365 = vrot.slane %v363, 5
        %v366 = vsel %vm222, %v361, %v365
        %v368 = vshrl.u32 %v207, 16
        %v370 = vrot.slane %v368, 4
        %v371 = vshll.u32 %v207, 16
        %v373 = vrot.slane %v371, 5
        %v374 = vor.u32 %v370, %v373
        %v375 = vrot.slane %v374, 4
        %v377 = vshll.u32 %v208, 16
        %v379 = vrot.slane %v377, 5
        %v380 = vsel %vm222, %v375, %v379
        %v381 = vshrl.u32 %v208, 16
        %v383 = vrot.slane %v381, 4
        %v384 = vor.u32 %v383, %v379
        %v385 = vrot.slane %v384, 4
        %v387 = vshll.u32 %v209, 16
        %v389 = vrot.slane %v387, 5
        %v390 = vsel %vm222, %v385, %v389
        %v392 = vshrl.u32 %v210, 16
        %v394 = vrot.slane %v392, 4
        %v395 = vshll.u32 %v210, 16
        %v397 = vrot.slane %v395, 5
        %v398 = vor.u32 %v394, %v397
        %v399 = vrot.slane %v398, 4
        %v401 = vshll.u32 %v211, 16
        %v403 = vrot.slane %v401, 5
        %v404 = vsel %vm222, %v399, %v403
        %v405 = vshrl.u32 %v211, 16
        %v407 = vrot.slane %v405, 4
        %v408 = vor.u32 %v407, %v403
        %v409 = vrot.slane %v408, 4
        %v411 = vshll.u32 %v212, 16
        %v413 = vrot.slane %v411, 5
        %v414 = vsel %vm222, %v409, %v413
        %s415 = scalar_lea.vmem %s1, 2
        %v416 = vld [vmem:[%s415] sm:$0x3]
        %v417 = vunpack.c.l.b16 %v236
        %v418 = vunpack.c.l.b16 %v246
        %v419 = vunpack.c.l.b16 %v260
        %v420 = vunpack.c.l.b16 %v270
        %v421 = vunpack.c.l.b16 %v284
        %v422 = vunpack.c.l.b16 %v294
        %v423 = vunpack.c.l.b16 %v308
        %v424 = vunpack.c.l.b16 %v318
        %v425 = vunpack.c.l.b16 %v332
        %v426 = vunpack.c.l.b16 %v342
        %v427 = vunpack.c.l.b16 %v356
        %v428 = vunpack.c.l.b16 %v366
        %v429 = vunpack.c.l.b16 %v380
        %v430 = vunpack.c.l.b16 %v390
        %v431 = vunpack.c.l.b16 %v404
        %v432 = vunpack.c.l.b16 %v414
        %v433 = vpack.c.b16 %v418, %v417
        %v434 = vpack.c.b16 %v420, %v419
        %v435 = vpack.c.b16 %v422, %v421
        %v436 = vpack.c.b16 %v424, %v423
        %v437 = vpack.c.b16 %v426, %v425
        %v438 = vpack.c.b16 %v428, %v427
        %v439 = vpack.c.b16 %v430, %v429
        %v440 = vpack.c.b16 %v432, %v431
        %vm441 = vcmask 31744
        %v443 = vsel %vm441, %v433, 0
        %v446 = vsel %vm441, %v434, 0
        %v449 = vsel %vm441, %v435, 0
        %v452 = vsel %vm441, %v436, 0
        %v455 = vsel %vm441, %v437, 0
        %v458 = vsel %vm441, %v438, 0
        %v461 = vsel %vm441, %v439, 0
        %v464 = vsel %vm441, %v440, 0
        %vm466 = vcmask 1041408
        %v468 = vsel %vm466, %v416, 0
        %470 = vmatprep.subr.bf16.mxu0 0
        %471 = vmatpush1.bf16.msra.mxu0 %v468
        %472 = vmatprep.subr.bf16.mxu0 0
        %473 = vmatpush1.bf16.msra.mxu0 0
        %474 = vmatprep.subr.bf16.mxu0 0
        %475 = vmatpush1.bf16.msra.mxu0 0
        %476 = vmatprep.subr.bf16.mxu0 0
        %477 = vmatpush1.bf16.msra.mxu0 0
        %478 = vmatprep.subr.bf16.mxu0 0
        %479 = vmatpush1.bf16.msra.mxu0 0
        %480 = vmatprep.subr.bf16.mxu0 0
        %481 = vmatpush1.bf16.msra.mxu0 0
        %482 = vmatprep.subr.bf16.mxu0 0
        %483 = vmatpush1.bf16.msra.mxu0 0
        %484 = vmatprep.subr.bf16.mxu0 0
        %485 = vmatpush1.bf16.msra.mxu0 0
        %486 = vmatprep.subr.bf16.mxu0 0
        %487 = vmatpush1.bf16.msra.mxu0 0
        %488 = vmatprep.subr.bf16.mxu0 0
        %489 = vmatpush1.bf16.msra.mxu0 0
        %490 = vmatprep.subr.bf16.mxu0 0
        %491 = vmatpush1.bf16.msra.mxu0 0
        %492 = vmatprep.subr.bf16.mxu0 0
        %493 = vmatpush1.bf16.msra.mxu0 0
        %494 = vmatprep.subr.bf16.mxu0 0
        %495 = vmatpush1.bf16.msra.mxu0 0
        %496 = vmatprep.subr.bf16.mxu0 0
        %497 = vmatpush1.bf16.msra.mxu0 0
        %498 = vmatprep.subr.bf16.mxu0 0
        %499 = vmatpush1.bf16.msra.mxu0 0
        %500 = vmatprep.subr.bf16.mxu0 0
        %501 = vmatpush1.bf16.msra.mxu0 0
        %502 = vmatprep.mubr.bf16.mxu0 0
        %503 = vmatmul.mubr.bf16.gmra.mrb[0].mxu0 %v443
        %v504 = vpop.f32.mrb[0].mxu0
        %v505 = vadd.f32 0.0, %v504
        %v506 = vpop.f32.mrb[0].mxu0
        %v507 = vpop.f32.mrb[0].mxu0
        %v508 = vadd.f32 0.0, %v507
        %v509 = vpop.f32.mrb[0].mxu0
        %510 = vmatprep.mubr.bf16.mxu0 0
        %511 = vmatmul.mubr.bf16.gmra.mrb[0].mxu0 %v446
        %v512 = vpop.f32.mrb[0].mxu0
        %v513 = vadd.f32 0.0, %v512
        %v514 = vpop.f32.mrb[0].mxu0
        %v515 = vpop.f32.mrb[0].mxu0
        %v516 = vadd.f32 0.0, %v515
        %v517 = vpop.f32.mrb[0].mxu0
        %518 = vmatprep.mubr.bf16.mxu0 0
        %519 = vmatmul.mubr.bf16.gmra.mrb[0].mxu0 %v449
        %v520 = vpop.f32.mrb[0].mxu0
        %v521 = vadd.f32 0.0, %v520
        %v522 = vpop.f32.mrb[0].mxu0
        %v523 = vpop.f32.mrb[0].mxu0
        %v524 = vadd.f32 0.0, %v523
        %v525 = vpop.f32.mrb[0].mxu0
        %526 = vmatprep.mubr.bf16.mxu0 0
        %527 = vmatmul.mubr.bf16.gmra.mrb[0].mxu0 %v452
        %v528 = vpop.f32.mrb[0].mxu0
        %v529 = vadd.f32 0.0, %v528
        %v530 = vpop.f32.mrb[0].mxu0
        %v531 = vpop.f32.mrb[0].mxu0
        %v532 = vadd.f32 0.0, %v531
        %v533 = vpop.f32.mrb[0].mxu0
        %534 = vmatprep.mubr.bf16.mxu0 0
        %535 = vmatmul.mubr.bf16.gmra.mrb[0].mxu0 %v455
        %v536 = vpop.f32.mrb[0].mxu0
        %v537 = vadd.f32 0.0, %v536
        %v538 = vpop.f32.mrb[0].mxu0
        %v539 = vpop.f32.mrb[0].mxu0
        %v540 = vadd.f32 0.0, %v539
        %v541 = vpop.f32.mrb[0].mxu0
        %542 = vmatprep.mubr.bf16.mxu0 0
        %543 = vmatmul.mubr.bf16.gmra.mrb[0].mxu0 %v458
        %v544 = vpop.f32.mrb[0].mxu0
        %v545 = vadd.f32 0.0, %v544
        %v546 = vpop.f32.mrb[0].mxu0
        %v547 = vpop.f32.mrb[0].mxu0
        %v548 = vadd.f32 0.0, %v547
        %v549 = vpop.f32.mrb[0].mxu0
        %550 = vmatprep.mubr.bf16.mxu0 0
        %551 = vmatmul.mubr.bf16.gmra.mrb[0].mxu0 %v461
        %v552 = vpop.f32.mrb[0].mxu0
        %v553 = vadd.f32 0.0, %v552
        %v554 = vpop.f32.mrb[0].mxu0
        %v555 = vpop.f32.mrb[0].mxu0
        %v556 = vadd.f32 0.0, %v555
        %v557 = vpop.f32.mrb[0].mxu0
        %558 = vmatprep.mubr.bf16.mxu0 0
        %559 = vmatmul.mubr.bf16.gmra.mrb[0].mxu0 %v464
        %v560 = vpop.f32.mrb[0].mxu0
        %v561 = vadd.f32 0.0, %v560
        %v562 = vpop.f32.mrb[0].mxu0
        %v563 = vpop.f32.mrb[0].mxu0
        %v564 = vadd.f32 0.0, %v563
        %v565 = vpop.f32.mrb[0].mxu0
        %566 = vdwg.mxu0
        %v583 = vunpack.c.l.b16 %v189
        %v584 = vunpack.c.l.b16 %v190
        %v585 = vunpack.c.l.b16 %v192
        %v586 = vunpack.c.l.b16 %v193
        %v587 = vunpack.c.l.b16 %v195
        %v588 = vunpack.c.l.b16 %v196
        %v589 = vunpack.c.l.b16 %v198
        %v590 = vunpack.c.l.b16 %v199
        %v591 = vunpack.c.l.b16 %v201
        %v592 = vunpack.c.l.b16 %v202
        %v593 = vunpack.c.l.b16 %v204
        %v594 = vunpack.c.l.b16 %v205
        %v595 = vunpack.c.l.b16 %v207
        %v596 = vunpack.c.l.b16 %v208
        %v597 = vunpack.c.l.b16 %v210
        %v598 = vunpack.c.l.b16 %v211
        %v599 = vpack.c.b16 %v584, %v583
        %v600 = vpack.c.b16 %v586, %v585
        %v601 = vpack.c.b16 %v588, %v587
        %v602 = vpack.c.b16 %v590, %v589
        %v603 = vpack.c.b16 %v592, %v591
        %v604 = vpack.c.b16 %v594, %v593
        %v605 = vpack.c.b16 %v596, %v595
        %v606 = vpack.c.b16 %v598, %v597
        %v608 = vsel %vm441, %v599, 0
        %v611 = vsel %vm441, %v600, 0
        %v614 = vsel %vm441, %v601, 0
        %v617 = vsel %vm441, %v602, 0
        %v620 = vsel %vm441, %v603, 0
        %v623 = vsel %vm441, %v604, 0
        %v626 = vsel %vm441, %v605, 0
        %v629 = vsel %vm441, %v606, 0
        %v632 = vsel %vm466, %v219, 0
        %634 = vmatprep.subr.bf16.mxu0 0
        %635 = vmatpush1.bf16.msra.mxu0 %v632
        %636 = vmatprep.subr.bf16.mxu0 0
        %637 = vmatpush1.bf16.msra.mxu0 0
        %638 = vmatprep.subr.bf16.mxu0 0
        %639 = vmatpush1.bf16.msra.mxu0 0
        %640 = vmatprep.subr.bf16.mxu0 0
        %641 = vmatpush1.bf16.msra.mxu0 0
        %642 = vmatprep.subr.bf16.mxu0 0
        %643 = vmatpush1.bf16.msra.mxu0 0
        %644 = vmatprep.subr.bf16.mxu0 0
        %645 = vmatpush1.bf16.msra.mxu0 0
        %646 = vmatprep.subr.bf16.mxu0 0
        %647 = vmatpush1.bf16.msra.mxu0 0
        %648 = vmatprep.subr.bf16.mxu0 0
        %649 = vmatpush1.bf16.msra.mxu0 0
        %650 = vmatprep.subr.bf16.mxu0 0
        %651 = vmatpush1.bf16.msra.mxu0 0
        %652 = vmatprep.subr.bf16.mxu0 0
        %653 = vmatpush1.bf16.msra.mxu0 0
        %654 = vmatprep.subr.bf16.mxu0 0
        %655 = vmatpush1.bf16.msra.mxu0 0
        %656 = vmatprep.subr.bf16.mxu0 0
        %657 = vmatpush1.bf16.msra.mxu0 0
        %658 = vmatprep.subr.bf16.mxu0 0
        %659 = vmatpush1.bf16.msra.mxu0 0
        %660 = vmatprep.subr.bf16.mxu0 0
        %661 = vmatpush1.bf16.msra.mxu0 0
        %662 = vmatprep.subr.bf16.mxu0 0
        %663 = vmatpush1.bf16.msra.mxu0 0
        %664 = vmatprep.subr.bf16.mxu0 0
        %665 = vmatpush1.bf16.msra.mxu0 0
        %666 = vmatprep.mubr.bf16.mxu0 0
        %667 = vmatmul.mubr.bf16.gmra.mrb[0].mxu0 %v608
        %v668 = vpop.f32.mrb[0].mxu0
        %v669 = vadd.f32 %v505, %v668
        %v670 = vpop.f32.mrb[0].mxu0
        %v671 = vpop.f32.mrb[0].mxu0
        %v672 = vadd.f32 %v508, %v671
        %v673 = vpop.f32.mrb[0].mxu0
        %674 = vmatprep.mubr.bf16.mxu0 0
        %675 = vmatmul.mubr.bf16.gmra.mrb[0].mxu0 %v611
        %v676 = vpop.f32.mrb[0].mxu0
        %v677 = vadd.f32 %v513, %v676
        %v678 = vpop.f32.mrb[0].mxu0
        %v679 = vpop.f32.mrb[0].mxu0
        %v680 = vadd.f32 %v516, %v679
        %v681 = vpop.f32.mrb[0].mxu0
        %682 = vmatprep.mubr.bf16.mxu0 0
        %683 = vmatmul.mubr.bf16.gmra.mrb[0].mxu0 %v614
        %v684 = vpop.f32.mrb[0].mxu0
        %v685 = vadd.f32 %v521, %v684
        %v686 = vpop.f32.mrb[0].mxu0
        %v687 = vpop.f32.mrb[0].mxu0
        %v688 = vadd.f32 %v524, %v687
        %v689 = vpop.f32.mrb[0].mxu0
        %690 = vmatprep.mubr.bf16.mxu0 0
        %691 = vmatmul.mubr.bf16.gmra.mrb[0].mxu0 %v617
        %v692 = vpop.f32.mrb[0].mxu0
        %v693 = vadd.f32 %v529, %v692
        %v694 = vpop.f32.mrb[0].mxu0
        %v695 = vpop.f32.mrb[0].mxu0
        %v696 = vadd.f32 %v532, %v695
        %v697 = vpop.f32.mrb[0].mxu0
        %698 = vmatprep.mubr.bf16.mxu0 0
        %699 = vmatmul.mubr.bf16.gmra.mrb[0].mxu0 %v620
        %v700 = vpop.f32.mrb[0].mxu0
        %v701 = vadd.f32 %v537, %v700
        %v702 = vpop.f32.mrb[0].mxu0
        %v703 = vpop.f32.mrb[0].mxu0
        %v704 = vadd.f32 %v540, %v703
        %v705 = vpop.f32.mrb[0].mxu0
        %706 = vmatprep.mubr.bf16.mxu0 0
        %707 = vmatmul.mubr.bf16.gmra.mrb[0].mxu0 %v623
        %v708 = vpop.f32.mrb[0].mxu0
        %v709 = vadd.f32 %v545, %v708
        %v710 = vpop.f32.mrb[0].mxu0
        %v711 = vpop.f32.mrb[0].mxu0
        %v712 = vadd.f32 %v548, %v711
        %v713 = vpop.f32.mrb[0].mxu0
        %714 = vmatprep.mubr.bf16.mxu0 0
        %715 = vmatmul.mubr.bf16.gmra.mrb[0].mxu0 %v626
        %v716 = vpop.f32.mrb[0].mxu0
        %v717 = vadd.f32 %v553, %v716
        %v718 = vpop.f32.mrb[0].mxu0
        %v719 = vpop.f32.mrb[0].mxu0
        %v720 = vadd.f32 %v556, %v719
        %v721 = vpop.f32.mrb[0].mxu0
        %722 = vmatprep.mubr.bf16.mxu0 0
        %723 = vmatmul.mubr.bf16.gmra.mrb[0].mxu0 %v629
        %v724 = vpop.f32.mrb[0].mxu0
        %v725 = vadd.f32 %v561, %v724
        %v726 = vpop.f32.mrb[0].mxu0
        %v727 = vpop.f32.mrb[0].mxu0
        %v728 = vadd.f32 %v564, %v727
        %v729 = vpop.f32.mrb[0].mxu0
        %730 = vdwg.mxu0
        %vm739 = vcmask 1042432
        %vm740 = vcmask 1046532
        %vm741 = vmor %vm739, %vm740
        %v742 = vrot.slane %v189, 5
        %v743 = vrot.slane %v742, 4
        %v744 = vrot.slane %v190, 5
        %v745 = vsel %vm741, %v743, %v744
        %v746 = vrot.slane %v744, 4
        %v747 = vrot.slane %v191, 5
        %v748 = vsel %vm741, %v746, %v747
        %v749 = vrot.slane %v192, 5
        %v750 = vrot.slane %v749, 4
        %v751 = vrot.slane %v193, 5
        %v752 = vsel %vm741, %v750, %v751
        %v753 = vrot.slane %v751, 4
        %v754 = vrot.slane %v194, 5
        %v755 = vsel %vm741, %v753, %v754
        %v756 = vrot.slane %v195, 5
        %v757 = vrot.slane %v756, 4
        %v758 = vrot.slane %v196, 5
        %v759 = vsel %vm741, %v757, %v758
        %v760 = vrot.slane %v758, 4
        %v761 = vrot.slane %v197, 5
        %v762 = vsel %vm741, %v760, %v761
        %v763 = vrot.slane %v198, 5
        %v764 = vrot.slane %v763, 4
        %v765 = vrot.slane %v199, 5
        %v766 = vsel %vm741, %v764, %v765
        %v767 = vrot.slane %v765, 4
        %v768 = vrot.slane %v200, 5
        %v769 = vsel %vm741, %v767, %v768
        %v770 = vrot.slane %v201, 5
        %v771 = vrot.slane %v770, 4
        %v772 = vrot.slane %v202, 5
        %v773 = vsel %vm741, %v771, %v772
        %v774 = vrot.slane %v772, 4
        %v775 = vrot.slane %v203, 5
        %v776 = vsel %vm741, %v774, %v775
        %v777 = vrot.slane %v204, 5
        %v778 = vrot.slane %v777, 4
        %v779 = vrot.slane %v205, 5
        %v780 = vsel %vm741, %v778, %v779
        %v781 = vrot.slane %v779, 4
        %v782 = vrot.slane %v206, 5
        %v783 = vsel %vm741, %v781, %v782
        %v784 = vrot.slane %v207, 5
        %v785 = vrot.slane %v784, 4
        %v786 = vrot.slane %v208, 5
        %v787 = vsel %vm741, %v785, %v786
        %v788 = vrot.slane %v786, 4
        %v789 = vrot.slane %v209, 5
        %v790 = vsel %vm741, %v788, %v789
        %v791 = vrot.slane %v210, 5
        %v792 = vrot.slane %v791, 4
        %v793 = vrot.slane %v211, 5
        %v794 = vsel %vm741, %v792, %v793
        %v795 = vrot.slane %v793, 4
        %v796 = vrot.slane %v212, 5
        %v797 = vsel %vm741, %v795, %v796
        %s798 = scalar_lea.vmem %s1, 4
        %v799 = vld [vmem:[%s798] sm:$0x3]
        %v800 = vunpack.c.l.b16 %v745
        %v801 = vunpack.c.l.b16 %v748
        %v802 = vunpack.c.l.b16 %v752
        %v803 = vunpack.c.l.b16 %v755
        %v804 = vunpack.c.l.b16 %v759
        %v805 = vunpack.c.l.b16 %v762
        %v806 = vunpack.c.l.b16 %v766
        %v807 = vunpack.c.l.b16 %v769
        %v808 = vunpack.c.l.b16 %v773
        %v809 = vunpack.c.l.b16 %v776
        %v810 = vunpack.c.l.b16 %v780
        %v811 = vunpack.c.l.b16 %v783
        %v812 = vunpack.c.l.b16 %v787
        %v813 = vunpack.c.l.b16 %v790
        %v814 = vunpack.c.l.b16 %v794
        %v815 = vunpack.c.l.b16 %v797
        %v816 = vpack.c.b16 %v801, %v800
        %v817 = vpack.c.b16 %v803, %v802
        %v818 = vpack.c.b16 %v805, %v804
        %v819 = vpack.c.b16 %v807, %v806
        %v820 = vpack.c.b16 %v809, %v808
        %v821 = vpack.c.b16 %v811, %v810
        %v822 = vpack.c.b16 %v813, %v812
        %v823 = vpack.c.b16 %v815, %v814
        %v825 = vsel %vm441, %v816, 0
        %v828 = vsel %vm441, %v817, 0
        %v831 = vsel %vm441, %v818, 0
        %v834 = vsel %vm441, %v819, 0
        %v837 = vsel %vm441, %v820, 0
        %v840 = vsel %vm441, %v821, 0
        %v843 = vsel %vm441, %v822, 0
        %v846 = vsel %vm441, %v823, 0
        %v849 = vsel %vm466, %v799, 0
        %851 = vmatprep.subr.bf16.mxu0 0
        %852 = vmatpush1.bf16.msra.mxu0 %v849
        %853 = vmatprep.subr.bf16.mxu0 0
        %854 = vmatpush1.bf16.msra.mxu0 0
        %855 = vmatprep.subr.bf16.mxu0 0
        %856 = vmatpush1.bf16.msra.mxu0 0
        %857 = vmatprep.subr.bf16.mxu0 0
        %858 = vmatpush1.bf16.msra.mxu0 0
        %859 = vmatprep.subr.bf16.mxu0 0
        %860 = vmatpush1.bf16.msra.mxu0 0
        %861 = vmatprep.subr.bf16.mxu0 0
        %862 = vmatpush1.bf16.msra.mxu0 0
        %863 = vmatprep.subr.bf16.mxu0 0
        %864 = vmatpush1.bf16.msra.mxu0 0
        %865 = vmatprep.subr.bf16.mxu0 0
        %866 = vmatpush1.bf16.msra.mxu0 0
        %867 = vmatprep.subr.bf16.mxu0 0
        %868 = vmatpush1.bf16.msra.mxu0 0
        %869 = vmatprep.subr.bf16.mxu0 0
        %870 = vmatpush1.bf16.msra.mxu0 0
        %871 = vmatprep.subr.bf16.mxu0 0
        %872 = vmatpush1.bf16.msra.mxu0 0
        %873 = vmatprep.subr.bf16.mxu0 0
        %874 = vmatpush1.bf16.msra.mxu0 0
        %875 = vmatprep.subr.bf16.mxu0 0
        %876 = vmatpush1.bf16.msra.mxu0 0
        %877 = vmatprep.subr.bf16.mxu0 0
        %878 = vmatpush1.bf16.msra.mxu0 0
        %879 = vmatprep.subr.bf16.mxu0 0
        %880 = vmatpush1.bf16.msra.mxu0 0
        %881 = vmatprep.subr.bf16.mxu0 0
        %882 = vmatpush1.bf16.msra.mxu0 0
        %883 = vmatprep.mubr.bf16.mxu0 0
        %884 = vmatmul.mubr.bf16.gmra.mrb[0].mxu0 %v825
        %v885 = vpop.f32.mrb[0].mxu0
        %v886 = vadd.f32 0.0, %v885
        %v887 = vpop.f32.mrb[0].mxu0
        %v888 = vpop.f32.mrb[0].mxu0
        %v889 = vadd.f32 0.0, %v888
        %v890 = vpop.f32.mrb[0].mxu0
        %891 = vmatprep.mubr.bf16.mxu0 0
        %892 = vmatmul.mubr.bf16.gmra.mrb[0].mxu0 %v828
        %v893 = vpop.f32.mrb[0].mxu0
        %v894 = vadd.f32 0.0, %v893
        %v895 = vpop.f32.mrb[0].mxu0
        %v896 = vpop.f32.mrb[0].mxu0
        %v897 = vadd.f32 0.0, %v896
        %v898 = vpop.f32.mrb[0].mxu0
        %899 = vmatprep.mubr.bf16.mxu0 0
        %900 = vmatmul.mubr.bf16.gmra.mrb[0].mxu0 %v831
        %v901 = vpop.f32.mrb[0].mxu0
        %v902 = vadd.f32 0.0, %v901
        %v903 = vpop.f32.mrb[0].mxu0
        %v904 = vpop.f32.mrb[0].mxu0
        %v905 = vadd.f32 0.0, %v904
        %v906 = vpop.f32.mrb[0].mxu0
        %907 = vmatprep.mubr.bf16.mxu0 0
        %908 = vmatmul.mubr.bf16.gmra.mrb[0].mxu0 %v834
        %v909 = vpop.f32.mrb[0].mxu0
        %v910 = vadd.f32 0.0, %v909
        %v911 = vpop.f32.mrb[0].mxu0
        %v912 = vpop.f32.mrb[0].mxu0
        %v913 = vadd.f32 0.0, %v912
        %v914 = vpop.f32.mrb[0].mxu0
        %915 = vmatprep.mubr.bf16.mxu0 0
        %916 = vmatmul.mubr.bf16.gmra.mrb[0].mxu0 %v837
        %v917 = vpop.f32.mrb[0].mxu0
        %v918 = vadd.f32 0.0, %v917
        %v919 = vpop.f32.mrb[0].mxu0
        %v920 = vpop.f32.mrb[0].mxu0
        %v921 = vadd.f32 0.0, %v920
        %v922 = vpop.f32.mrb[0].mxu0
        %923 = vmatprep.mubr.bf16.mxu0 0
        %924 = vmatmul.mubr.bf16.gmra.mrb[0].mxu0 %v840
        %v925 = vpop.f32.mrb[0].mxu0
        %v926 = vadd.f32 0.0, %v925
        %v927 = vpop.f32.mrb[0].mxu0
        %v928 = vpop.f32.mrb[0].mxu0
        %v929 = vadd.f32 0.0, %v928
        %v930 = vpop.f32.mrb[0].mxu0
        %931 = vmatprep.mubr.bf16.mxu0 0
        %932 = vmatmul.mubr.bf16.gmra.mrb[0].mxu0 %v843
        %v933 = vpop.f32.mrb[0].mxu0
        %v934 = vadd.f32 0.0, %v933
        %v935 = vpop.f32.mrb[0].mxu0
        %v936 = vpop.f32.mrb[0].mxu0
        %v937 = vadd.f32 0.0, %v936
        %v938 = vpop.f32.mrb[0].mxu0
        %939 = vmatprep.mubr.bf16.mxu0 0
        %940 = vmatmul.mubr.bf16.gmra.mrb[0].mxu0 %v846
        %v941 = vpop.f32.mrb[0].mxu0
        %v942 = vadd.f32 0.0, %v941
        %v943 = vpop.f32.mrb[0].mxu0
        %v944 = vpop.f32.mrb[0].mxu0
        %v945 = vadd.f32 0.0, %v944
        %v946 = vpop.f32.mrb[0].mxu0
        %947 = vdwg.mxu0
        %v948 = vadd.f32 %v669, %v886
        %v949 = vadd.f32 %v672, %v889
        %v950 = vadd.f32 %v677, %v894
        %v951 = vadd.f32 %v680, %v897
        %v952 = vadd.f32 %v685, %v902
        %v953 = vadd.f32 %v688, %v905
        %v954 = vadd.f32 %v693, %v910
        %v955 = vadd.f32 %v696, %v913
        %v956 = vadd.f32 %v701, %v918
        %v957 = vadd.f32 %v704, %v921
        %v958 = vadd.f32 %v709, %v926
        %v959 = vadd.f32 %v712, %v929
        %v960 = vadd.f32 %v717, %v934
        %v961 = vadd.f32 %v720, %v937
        %v962 = vadd.f32 %v725, %v942
        %v963 = vadd.f32 %v728, %v945
        %s964 = scalar_lea.vmem %s1, 6
        %v965 = vld [vmem:[%s964] sm:$0x3]
        %v968 = vunpack.c.l.b16 %v213
        %v969 = vunpack.c.l.b16 %v214
        %v970 = vpack.c.b16 %v969, %v968
        %v972 = vsel %vm441, %v970, 0
        %v975 = vsel %vm466, %v965, 0
        %977 = vmatprep.subr.bf16.mxu0 0
        %978 = vmatpush1.bf16.msra.mxu0 %v975
        %979 = vmatprep.subr.bf16.mxu0 0
        %980 = vmatpush1.bf16.msra.mxu0 0
        %981 = vmatprep.subr.bf16.mxu0 0
        %982 = vmatpush1.bf16.msra.mxu0 0
        %983 = vmatprep.subr.bf16.mxu0 0
        %984 = vmatpush1.bf16.msra.mxu0 0
        %985 = vmatprep.subr.bf16.mxu0 0
        %986 = vmatpush1.bf16.msra.mxu0 0
        %987 = vmatprep.subr.bf16.mxu0 0
        %988 = vmatpush1.bf16.msra.mxu0 0
        %989 = vmatprep.subr.bf16.mxu0 0
        %990 = vmatpush1.bf16.msra.mxu0 0
        %991 = vmatprep.subr.bf16.mxu0 0
        %992 = vmatpush1.bf16.msra.mxu0 0
        %993 = vmatprep.subr.bf16.mxu0 0
        %994 = vmatpush1.bf16.msra.mxu0 0
        %995 = vmatprep.subr.bf16.mxu0 0
        %996 = vmatpush1.bf16.msra.mxu0 0
        %997 = vmatprep.subr.bf16.mxu0 0
        %998 = vmatpush1.bf16.msra.mxu0 0
        %999 = vmatprep.subr.bf16.mxu0 0
        %1000 = vmatpush1.bf16.msra.mxu0 0
        %1001 = vmatprep.subr.bf16.mxu0 0
        %1002 = vmatpush1.bf16.msra.mxu0 0
        %1003 = vmatprep.subr.bf16.mxu0 0
        %1004 = vmatpush1.bf16.msra.mxu0 0
        %1005 = vmatprep.subr.bf16.mxu0 0
        %1006 = vmatpush1.bf16.msra.mxu0 0
        %1007 = vmatprep.subr.bf16.mxu0 0
        %1008 = vmatpush1.bf16.msra.mxu0 0
        %1009 = vmatprep.mubr.bf16.mxu0 0
        %1010 = vmatmul.mubr.bf16.gmra.mrb[0].mxu0 %v611
        %v1011 = vpop.f32.mrb[0].mxu0
        %v1012 = vadd.f32 0.0, %v1011
        %v1013 = vpop.f32.mrb[0].mxu0
        %v1014 = vpop.f32.mrb[0].mxu0
        %v1015 = vadd.f32 0.0, %v1014
        %v1016 = vpop.f32.mrb[0].mxu0
        %1017 = vmatprep.mubr.bf16.mxu0 0
        %1018 = vmatmul.mubr.bf16.gmra.mrb[0].mxu0 %v614
        %v1019 = vpop.f32.mrb[0].mxu0
        %v1020 = vadd.f32 0.0, %v1019
        %v1021 = vpop.f32.mrb[0].mxu0
        %v1022 = vpop.f32.mrb[0].mxu0
        %v1023 = vadd.f32 0.0, %v1022
        %v1024 = vpop.f32.mrb[0].mxu0
        %1025 = vmatprep.mubr.bf16.mxu0 0
        %1026 = vmatmul.mubr.bf16.gmra.mrb[0].mxu0 %v617
        %v1027 = vpop.f32.mrb[0].mxu0
        %v1028 = vadd.f32 0.0, %v1027
        %v1029 = vpop.f32.mrb[0].mxu0
        %v1030 = vpop.f32.mrb[0].mxu0
        %v1031 = vadd.f32 0.0, %v1030
        %v1032 = vpop.f32.mrb[0].mxu0
        %1033 = vmatprep.mubr.bf16.mxu0 0
        %1034 = vmatmul.mubr.bf16.gmra.mrb[0].mxu0 %v620
        %v1035 = vpop.f32.mrb[0].mxu0
        %v1036 = vadd.f32 0.0, %v1035
        %v1037 = vpop.f32.mrb[0].mxu0
        %v1038 = vpop.f32.mrb[0].mxu0
        %v1039 = vadd.f32 0.0, %v1038
        %v1040 = vpop.f32.mrb[0].mxu0
        %1041 = vmatprep.mubr.bf16.mxu0 0
        %1042 = vmatmul.mubr.bf16.gmra.mrb[0].mxu0 %v623
        %v1043 = vpop.f32.mrb[0].mxu0
        %v1044 = vadd.f32 0.0, %v1043
        %v1045 = vpop.f32.mrb[0].mxu0
        %v1046 = vpop.f32.mrb[0].mxu0
        %v1047 = vadd.f32 0.0, %v1046
        %v1048 = vpop.f32.mrb[0].mxu0
        %1049 = vmatprep.mubr.bf16.mxu0 0
        %1050 = vmatmul.mubr.bf16.gmra.mrb[0].mxu0 %v626
        %v1051 = vpop.f32.mrb[0].mxu0
        %v1052 = vadd.f32 0.0, %v1051
        %v1053 = vpop.f32.mrb[0].mxu0
        %v1054 = vpop.f32.mrb[0].mxu0
        %v1055 = vadd.f32 0.0, %v1054
        %v1056 = vpop.f32.mrb[0].mxu0
        %1057 = vmatprep.mubr.bf16.mxu0 0
        %1058 = vmatmul.mubr.bf16.gmra.mrb[0].mxu0 %v629
        %v1059 = vpop.f32.mrb[0].mxu0
        %v1060 = vadd.f32 0.0, %v1059
        %v1061 = vpop.f32.mrb[0].mxu0
        %v1062 = vpop.f32.mrb[0].mxu0
        %v1063 = vadd.f32 0.0, %v1062
        %v1064 = vpop.f32.mrb[0].mxu0
        %1065 = vmatprep.mubr.bf16.mxu0 0
        %1066 = vmatmul.mubr.bf16.gmra.mrb[0].mxu0 %v972
        %v1067 = vpop.f32.mrb[0].mxu0
        %v1068 = vadd.f32 0.0, %v1067
        %v1069 = vpop.f32.mrb[0].mxu0
        %v1070 = vpop.f32.mrb[0].mxu0
        %v1071 = vadd.f32 0.0, %v1070
        %v1072 = vpop.f32.mrb[0].mxu0
        %1073 = vdwg.mxu0
        %v1074 = vadd.f32 %v948, %v1012
        %v1075 = vadd.f32 %v949, %v1015
        %v1076 = vadd.f32 %v950, %v1020
        %v1077 = vadd.f32 %v951, %v1023
        %v1078 = vadd.f32 %v952, %v1028
        %v1079 = vadd.f32 %v953, %v1031
        %v1080 = vadd.f32 %v954, %v1036
        %v1081 = vadd.f32 %v955, %v1039
        %v1082 = vadd.f32 %v956, %v1044
        %v1083 = vadd.f32 %v957, %v1047
        %v1084 = vadd.f32 %v958, %v1052
        %v1085 = vadd.f32 %v959, %v1055
        %v1086 = vadd.f32 %v960, %v1060
        %v1087 = vadd.f32 %v961, %v1063
        %v1088 = vadd.f32 %v962, %v1068
        %v1089 = vadd.f32 %v963, %v1071
        %v1091 = vshrl.u32 %v213, 16
        %v1093 = vrot.slane %v1091, 4
        %v1094 = vshll.u32 %v213, 16
        %v1096 = vrot.slane %v1094, 5
        %v1097 = vor.u32 %v1093, %v1096
        %v1098 = vrot.slane %v1097, 4
        %v1100 = vshll.u32 %v214, 16
        %v1102 = vrot.slane %v1100, 5
        %v1103 = vsel %vm222, %v1098, %v1102
        %v1104 = vshrl.u32 %v214, 16
        %v1106 = vrot.slane %v1104, 4
        %v1107 = vor.u32 %v1106, %v1102
        %v1108 = vrot.slane %v1107, 4
        %v1110 = vshll.u32 %v215, 16
        %v1112 = vrot.slane %v1110, 5
        %v1113 = vsel %vm222, %v1108, %v1112
        %s1114 = scalar_lea.vmem %s1, 8
        %v1115 = vld [vmem:[%s1114] sm:$0x3]
        %v1116 = vunpack.c.l.b16 %v1103
        %v1117 = vunpack.c.l.b16 %v1113
        %v1118 = vpack.c.b16 %v1117, %v1116
        %v1120 = vsel %vm441, %v1118, 0
        %v1123 = vsel %vm466, %v1115, 0
        %1125 = vmatprep.subr.bf16.mxu0 0
        %1126 = vmatpush1.bf16.msra.mxu0 %v1123
        %1127 = vmatprep.subr.bf16.mxu0 0
        %1128 = vmatpush1.bf16.msra.mxu0 0
        %1129 = vmatprep.subr.bf16.mxu0 0
        %1130 = vmatpush1.bf16.msra.mxu0 0
        %1131 = vmatprep.subr.bf16.mxu0 0
        %1132 = vmatpush1.bf16.msra.mxu0 0
        %1133 = vmatprep.subr.bf16.mxu0 0
        %1134 = vmatpush1.bf16.msra.mxu0 0
        %1135 = vmatprep.subr.bf16.mxu0 0
        %1136 = vmatpush1.bf16.msra.mxu0 0
        %1137 = vmatprep.subr.bf16.mxu0 0
        %1138 = vmatpush1.bf16.msra.mxu0 0
        %1139 = vmatprep.subr.bf16.mxu0 0
        %1140 = vmatpush1.bf16.msra.mxu0 0
        %1141 = vmatprep.subr.bf16.mxu0 0
        %1142 = vmatpush1.bf16.msra.mxu0 0
        %1143 = vmatprep.subr.bf16.mxu0 0
        %1144 = vmatpush1.bf16.msra.mxu0 0
        %1145 = vmatprep.subr.bf16.mxu0 0
        %1146 = vmatpush1.bf16.msra.mxu0 0
        %1147 = vmatprep.subr.bf16.mxu0 0
        %1148 = vmatpush1.bf16.msra.mxu0 0
        %1149 = vmatprep.subr.bf16.mxu0 0
        %1150 = vmatpush1.bf16.msra.mxu0 0
        %1151 = vmatprep.subr.bf16.mxu0 0
        %1152 = vmatpush1.bf16.msra.mxu0 0
        %1153 = vmatprep.subr.bf16.mxu0 0
        %1154 = vmatpush1.bf16.msra.mxu0 0
        %1155 = vmatprep.subr.bf16.mxu0 0
        %1156 = vmatpush1.bf16.msra.mxu0 0
        %1157 = vmatprep.mubr.bf16.mxu0 0
        %1158 = vmatmul.mubr.bf16.gmra.mrb[0].mxu0 %v446
        %v1159 = vpop.f32.mrb[0].mxu0
        %v1160 = vadd.f32 0.0, %v1159
        %v1161 = vpop.f32.mrb[0].mxu0
        %v1162 = vpop.f32.mrb[0].mxu0
        %v1163 = vadd.f32 0.0, %v1162
        %v1164 = vpop.f32.mrb[0].mxu0
        %1165 = vmatprep.mubr.bf16.mxu0 0
        %1166 = vmatmul.mubr.bf16.gmra.mrb[0].mxu0 %v449
        %v1167 = vpop.f32.mrb[0].mxu0
        %v1168 = vadd.f32 0.0, %v1167
        %v1169 = vpop.f32.mrb[0].mxu0
        %v1170 = vpop.f32.mrb[0].mxu0
        %v1171 = vadd.f32 0.0, %v1170
        %v1172 = vpop.f32.mrb[0].mxu0
        %1173 = vmatprep.mubr.bf16.mxu0 0
        %1174 = vmatmul.mubr.bf16.gmra.mrb[0].mxu0 %v452
        %v1175 = vpop.f32.mrb[0].mxu0
        %v1176 = vadd.f32 0.0, %v1175
        %v1177 = vpop.f32.mrb[0].mxu0
        %v1178 = vpop.f32.mrb[0].mxu0
        %v1179 = vadd.f32 0.0, %v1178
        %v1180 = vpop.f32.mrb[0].mxu0
        %1181 = vmatprep.mubr.bf16.mxu0 0
        %1182 = vmatmul.mubr.bf16.gmra.mrb[0].mxu0 %v455
        %v1183 = vpop.f32.mrb[0].mxu0
        %v1184 = vadd.f32 0.0, %v1183
        %v1185 = vpop.f32.mrb[0].mxu0
        %v1186 = vpop.f32.mrb[0].mxu0
        %v1187 = vadd.f32 0.0, %v1186
        %v1188 = vpop.f32.mrb[0].mxu0
        %1189 = vmatprep.mubr.bf16.mxu0 0
        %1190 = vmatmul.mubr.bf16.gmra.mrb[0].mxu0 %v458
        %v1191 = vpop.f32.mrb[0].mxu0
        %v1192 = vadd.f32 0.0, %v1191
        %v1193 = vpop.f32.mrb[0].mxu0
        %v1194 = vpop.f32.mrb[0].mxu0
        %v1195 = vadd.f32 0.0, %v1194
        %v1196 = vpop.f32.mrb[0].mxu0
        %1197 = vmatprep.mubr.bf16.mxu0 0
        %1198 = vmatmul.mubr.bf16.gmra.mrb[0].mxu0 %v461
        %v1199 = vpop.f32.mrb[0].mxu0
        %v1200 = vadd.f32 0.0, %v1199
        %v1201 = vpop.f32.mrb[0].mxu0
        %v1202 = vpop.f32.mrb[0].mxu0
        %v1203 = vadd.f32 0.0, %v1202
        %v1204 = vpop.f32.mrb[0].mxu0
        %1205 = vmatprep.mubr.bf16.mxu0 0
        %1206 = vmatmul.mubr.bf16.gmra.mrb[0].mxu0 %v464
        %v1207 = vpop.f32.mrb[0].mxu0
        %v1208 = vadd.f32 0.0, %v1207
        %v1209 = vpop.f32.mrb[0].mxu0
        %v1210 = vpop.f32.mrb[0].mxu0
        %v1211 = vadd.f32 0.0, %v1210
        %v1212 = vpop.f32.mrb[0].mxu0
        %1213 = vmatprep.mubr.bf16.mxu0 0
        %1214 = vmatmul.mubr.bf16.gmra.mrb[0].mxu0 %v1120
        %v1215 = vpop.f32.mrb[0].mxu0
        %v1216 = vadd.f32 0.0, %v1215
        %v1217 = vpop.f32.mrb[0].mxu0
        %v1218 = vpop.f32.mrb[0].mxu0
        %v1219 = vadd.f32 0.0, %v1218
        %v1220 = vpop.f32.mrb[0].mxu0
        %1221 = vdwg.mxu0
        %v1222 = vadd.f32 %v1074, %v1160
        %v1223 = vadd.f32 %v1075, %v1163
        %v1224 = vadd.f32 %v1076, %v1168
        %v1225 = vadd.f32 %v1077, %v1171
        %v1226 = vadd.f32 %v1078, %v1176
        %v1227 = vadd.f32 %v1079, %v1179
        %v1228 = vadd.f32 %v1080, %v1184
        %v1229 = vadd.f32 %v1081, %v1187
        %v1230 = vadd.f32 %v1082, %v1192
        %v1231 = vadd.f32 %v1083, %v1195
        %v1232 = vadd.f32 %v1084, %v1200
        %v1233 = vadd.f32 %v1085, %v1203
        %v1234 = vadd.f32 %v1086, %v1208
        %v1235 = vadd.f32 %v1087, %v1211
        %v1236 = vadd.f32 %v1088, %v1216
        %v1237 = vadd.f32 %v1089, %v1219
        %v1239 = vrot.slane %v213, 5
        %v1240 = vrot.slane %v1239, 4
        %v1241 = vrot.slane %v214, 5
        %v1242 = vsel %vm741, %v1240, %v1241
        %v1243 = vrot.slane %v1241, 4
        %v1244 = vrot.slane %v215, 5
        %v1245 = vsel %vm741, %v1243, %v1244
        %s1246 = scalar_lea.vmem %s1, 10
        %v1247 = vld [vmem:[%s1246] sm:$0x3]
        %v1248 = vunpack.c.l.b16 %v1242
        %v1249 = vunpack.c.l.b16 %v1245
        %v1250 = vpack.c.b16 %v1249, %v1248
        %v1252 = vsel %vm441, %v1250, 0
        %v1255 = vsel %vm466, %v1247, 0
        %1257 = vmatprep.subr.bf16.mxu0 0
        %1258 = vmatpush1.bf16.msra.mxu0 %v1255
        %1259 = vmatprep.subr.bf16.mxu0 0
        %1260 = vmatpush1.bf16.msra.mxu0 0
        %1261 = vmatprep.subr.bf16.mxu0 0
        %1262 = vmatpush1.bf16.msra.mxu0 0
        %1263 = vmatprep.subr.bf16.mxu0 0
        %1264 = vmatpush1.bf16.msra.mxu0 0
        %1265 = vmatprep.subr.bf16.mxu0 0
        %1266 = vmatpush1.bf16.msra.mxu0 0
        %1267 = vmatprep.subr.bf16.mxu0 0
        %1268 = vmatpush1.bf16.msra.mxu0 0
        %1269 = vmatprep.subr.bf16.mxu0 0
        %1270 = vmatpush1.bf16.msra.mxu0 0
        %1271 = vmatprep.subr.bf16.mxu0 0
        %1272 = vmatpush1.bf16.msra.mxu0 0
        %1273 = vmatprep.subr.bf16.mxu0 0
        %1274 = vmatpush1.bf16.msra.mxu0 0
        %1275 = vmatprep.subr.bf16.mxu0 0
        %1276 = vmatpush1.bf16.msra.mxu0 0
        %1277 = vmatprep.subr.bf16.mxu0 0
        %1278 = vmatpush1.bf16.msra.mxu0 0
        %1279 = vmatprep.subr.bf16.mxu0 0
        %1280 = vmatpush1.bf16.msra.mxu0 0
        %1281 = vmatprep.subr.bf16.mxu0 0
        %1282 = vmatpush1.bf16.msra.mxu0 0
        %1283 = vmatprep.subr.bf16.mxu0 0
        %1284 = vmatpush1.bf16.msra.mxu0 0
        %1285 = vmatprep.subr.bf16.mxu0 0
        %1286 = vmatpush1.bf16.msra.mxu0 0
        %1287 = vmatprep.subr.bf16.mxu0 0
        %1288 = vmatpush1.bf16.msra.mxu0 0
        %1289 = vmatprep.mubr.bf16.mxu0 0
        %1290 = vmatmul.mubr.bf16.gmra.mrb[0].mxu0 %v828
        %v1291 = vpop.f32.mrb[0].mxu0
        %v1292 = vadd.f32 0.0, %v1291
        %v1293 = vpop.f32.mrb[0].mxu0
        %v1294 = vpop.f32.mrb[0].mxu0
        %v1295 = vadd.f32 0.0, %v1294
        %v1296 = vpop.f32.mrb[0].mxu0
        %1297 = vmatprep.mubr.bf16.mxu0 0
        %1298 = vmatmul.mubr.bf16.gmra.mrb[0].mxu0 %v831
        %v1299 = vpop.f32.mrb[0].mxu0
        %v1300 = vadd.f32 0.0, %v1299
        %v1301 = vpop.f32.mrb[0].mxu0
        %v1302 = vpop.f32.mrb[0].mxu0
        %v1303 = vadd.f32 0.0, %v1302
        %v1304 = vpop.f32.mrb[0].mxu0
        %1305 = vmatprep.mubr.bf16.mxu0 0
        %1306 = vmatmul.mubr.bf16.gmra.mrb[0].mxu0 %v834
        %v1307 = vpop.f32.mrb[0].mxu0
        %v1308 = vadd.f32 0.0, %v1307
        %v1309 = vpop.f32.mrb[0].mxu0
        %v1310 = vpop.f32.mrb[0].mxu0
        %v1311 = vadd.f32 0.0, %v1310
        %v1312 = vpop.f32.mrb[0].mxu0
        %1313 = vmatprep.mubr.bf16.mxu0 0
        %1314 = vmatmul.mubr.bf16.gmra.mrb[0].mxu0 %v837
        %v1315 = vpop.f32.mrb[0].mxu0
        %v1316 = vadd.f32 0.0, %v1315
        %v1317 = vpop.f32.mrb[0].mxu0
        %v1318 = vpop.f32.mrb[0].mxu0
        %v1319 = vadd.f32 0.0, %v1318
        %v1320 = vpop.f32.mrb[0].mxu0
        %1321 = vmatprep.mubr.bf16.mxu0 0
        %1322 = vmatmul.mubr.bf16.gmra.mrb[0].mxu0 %v840
        %v1323 = vpop.f32.mrb[0].mxu0
        %v1324 = vadd.f32 0.0, %v1323
        %v1325 = vpop.f32.mrb[0].mxu0
        %v1326 = vpop.f32.mrb[0].mxu0
        %v1327 = vadd.f32 0.0, %v1326
        %v1328 = vpop.f32.mrb[0].mxu0
        %1329 = vmatprep.mubr.bf16.mxu0 0
        %1330 = vmatmul.mubr.bf16.gmra.mrb[0].mxu0 %v843
        %v1331 = vpop.f32.mrb[0].mxu0
        %v1332 = vadd.f32 0.0, %v1331
        %v1333 = vpop.f32.mrb[0].mxu0
        %v1334 = vpop.f32.mrb[0].mxu0
        %v1335 = vadd.f32 0.0, %v1334
        %v1336 = vpop.f32.mrb[0].mxu0
        %1337 = vmatprep.mubr.bf16.mxu0 0
        %1338 = vmatmul.mubr.bf16.gmra.mrb[0].mxu0 %v846
        %v1339 = vpop.f32.mrb[0].mxu0
        %v1340 = vadd.f32 0.0, %v1339
        %v1341 = vpop.f32.mrb[0].mxu0
        %v1342 = vpop.f32.mrb[0].mxu0
        %v1343 = vadd.f32 0.0, %v1342
        %v1344 = vpop.f32.mrb[0].mxu0
        %1345 = vmatprep.mubr.bf16.mxu0 0
        %1346 = vmatmul.mubr.bf16.gmra.mrb[0].mxu0 %v1252
        %v1347 = vpop.f32.mrb[0].mxu0
        %v1348 = vadd.f32 0.0, %v1347
        %v1349 = vpop.f32.mrb[0].mxu0
        %v1350 = vpop.f32.mrb[0].mxu0
        %v1351 = vadd.f32 0.0, %v1350
        %v1352 = vpop.f32.mrb[0].mxu0
        %1353 = vdwg.mxu0
        %v1354 = vadd.f32 %v1222, %v1292
        %v1355 = vadd.f32 %v1223, %v1295
        %v1356 = vadd.f32 %v1224, %v1300
        %v1357 = vadd.f32 %v1225, %v1303
        %v1358 = vadd.f32 %v1226, %v1308
        %v1359 = vadd.f32 %v1227, %v1311
        %v1360 = vadd.f32 %v1228, %v1316
        %v1361 = vadd.f32 %v1229, %v1319
        %v1362 = vadd.f32 %v1230, %v1324
        %v1363 = vadd.f32 %v1231, %v1327
        %v1364 = vadd.f32 %v1232, %v1332
        %v1365 = vadd.f32 %v1233, %v1335
        %v1366 = vadd.f32 %v1234, %v1340
        %v1367 = vadd.f32 %v1235, %v1343
        %v1368 = vadd.f32 %v1236, %v1348
        %v1369 = vadd.f32 %v1237, %v1351
        %s1370 = scalar_lea.vmem %s1, 12
        %v1371 = vld [vmem:[%s1370] sm:$0x3]
        %v1374 = vunpack.c.l.b16 %v216
        %v1375 = vunpack.c.l.b16 %v217
        %v1376 = vpack.c.b16 %v1375, %v1374
        %v1378 = vsel %vm441, %v1376, 0
        %v1381 = vsel %vm466, %v1371, 0
        %1383 = vmatprep.subr.bf16.mxu0 0
        %1384 = vmatpush1.bf16.msra.mxu0 %v1381
        %1385 = vmatprep.subr.bf16.mxu0 0
        %1386 = vmatpush1.bf16.msra.mxu0 0
        %1387 = vmatprep.subr.bf16.mxu0 0
        %1388 = vmatpush1.bf16.msra.mxu0 0
        %1389 = vmatprep.subr.bf16.mxu0 0
        %1390 = vmatpush1.bf16.msra.mxu0 0
        %1391 = vmatprep.subr.bf16.mxu0 0
        %1392 = vmatpush1.bf16.msra.mxu0 0
        %1393 = vmatprep.subr.bf16.mxu0 0
        %1394 = vmatpush1.bf16.msra.mxu0 0
        %1395 = vmatprep.subr.bf16.mxu0 0
        %1396 = vmatpush1.bf16.msra.mxu0 0
        %1397 = vmatprep.subr.bf16.mxu0 0
        %1398 = vmatpush1.bf16.msra.mxu0 0
        %1399 = vmatprep.subr.bf16.mxu0 0
        %1400 = vmatpush1.bf16.msra.mxu0 0
        %1401 = vmatprep.subr.bf16.mxu0 0
        %1402 = vmatpush1.bf16.msra.mxu0 0
        %1403 = vmatprep.subr.bf16.mxu0 0
        %1404 = vmatpush1.bf16.msra.mxu0 0
        %1405 = vmatprep.subr.bf16.mxu0 0
        %1406 = vmatpush1.bf16.msra.mxu0 0
        %1407 = vmatprep.subr.bf16.mxu0 0
        %1408 = vmatpush1.bf16.msra.mxu0 0
        %1409 = vmatprep.subr.bf16.mxu0 0
        %1410 = vmatpush1.bf16.msra.mxu0 0
        %1411 = vmatprep.subr.bf16.mxu0 0
        %1412 = vmatpush1.bf16.msra.mxu0 0
        %1413 = vmatprep.subr.bf16.mxu0 0
        %1414 = vmatpush1.bf16.msra.mxu0 0
        %1415 = vmatprep.mubr.bf16.mxu0 0
        %1416 = vmatmul.mubr.bf16.gmra.mrb[0].mxu0 %v614
        %v1417 = vpop.f32.mrb[0].mxu0
        %v1418 = vadd.f32 0.0, %v1417
        %v1419 = vpop.f32.mrb[0].mxu0
        %v1420 = vpop.f32.mrb[0].mxu0
        %v1421 = vadd.f32 0.0, %v1420
        %v1422 = vpop.f32.mrb[0].mxu0
        %1423 = vmatprep.mubr.bf16.mxu0 0
        %1424 = vmatmul.mubr.bf16.gmra.mrb[0].mxu0 %v617
        %v1425 = vpop.f32.mrb[0].mxu0
        %v1426 = vadd.f32 0.0, %v1425
        %v1427 = vpop.f32.mrb[0].mxu0
        %v1428 = vpop.f32.mrb[0].mxu0
        %v1429 = vadd.f32 0.0, %v1428
        %v1430 = vpop.f32.mrb[0].mxu0
        %1431 = vmatprep.mubr.bf16.mxu0 0
        %1432 = vmatmul.mubr.bf16.gmra.mrb[0].mxu0 %v620
        %v1433 = vpop.f32.mrb[0].mxu0
        %v1434 = vadd.f32 0.0, %v1433
        %v1435 = vpop.f32.mrb[0].mxu0
        %v1436 = vpop.f32.mrb[0].mxu0
        %v1437 = vadd.f32 0.0, %v1436
        %v1438 = vpop.f32.mrb[0].mxu0
        %1439 = vmatprep.mubr.bf16.mxu0 0
        %1440 = vmatmul.mubr.bf16.gmra.mrb[0].mxu0 %v623
        %v1441 = vpop.f32.mrb[0].mxu0
        %v1442 = vadd.f32 0.0, %v1441
        %v1443 = vpop.f32.mrb[0].mxu0
        %v1444 = vpop.f32.mrb[0].mxu0
        %v1445 = vadd.f32 0.0, %v1444
        %v1446 = vpop.f32.mrb[0].mxu0
        %1447 = vmatprep.mubr.bf16.mxu0 0
        %1448 = vmatmul.mubr.bf16.gmra.mrb[0].mxu0 %v626
        %v1449 = vpop.f32.mrb[0].mxu0
        %v1450 = vadd.f32 0.0, %v1449
        %v1451 = vpop.f32.mrb[0].mxu0
        %v1452 = vpop.f32.mrb[0].mxu0
        %v1453 = vadd.f32 0.0, %v1452
        %v1454 = vpop.f32.mrb[0].mxu0
        %1455 = vmatprep.mubr.bf16.mxu0 0
        %1456 = vmatmul.mubr.bf16.gmra.mrb[0].mxu0 %v629
        %v1457 = vpop.f32.mrb[0].mxu0
        %v1458 = vadd.f32 0.0, %v1457
        %v1459 = vpop.f32.mrb[0].mxu0
        %v1460 = vpop.f32.mrb[0].mxu0
        %v1461 = vadd.f32 0.0, %v1460
        %v1462 = vpop.f32.mrb[0].mxu0
        %1463 = vmatprep.mubr.bf16.mxu0 0
        %1464 = vmatmul.mubr.bf16.gmra.mrb[0].mxu0 %v972
        %v1465 = vpop.f32.mrb[0].mxu0
        %v1466 = vadd.f32 0.0, %v1465
        %v1467 = vpop.f32.mrb[0].mxu0
        %v1468 = vpop.f32.mrb[0].mxu0
        %v1469 = vadd.f32 0.0, %v1468
        %v1470 = vpop.f32.mrb[0].mxu0
        %1471 = vmatprep.mubr.bf16.mxu0 0
        %1472 = vmatmul.mubr.bf16.gmra.mrb[0].mxu0 %v1378
        %v1473 = vpop.f32.mrb[0].mxu0
        %v1474 = vadd.f32 0.0, %v1473
        %v1475 = vpop.f32.mrb[0].mxu0
        %v1476 = vpop.f32.mrb[0].mxu0
        %v1477 = vadd.f32 0.0, %v1476
        %v1478 = vpop.f32.mrb[0].mxu0
        %1479 = vdwg.mxu0
        %v1480 = vadd.f32 %v1354, %v1418
        %v1481 = vadd.f32 %v1355, %v1421
        %v1482 = vadd.f32 %v1356, %v1426
        %v1483 = vadd.f32 %v1357, %v1429
        %v1484 = vadd.f32 %v1358, %v1434
        %v1485 = vadd.f32 %v1359, %v1437
        %v1486 = vadd.f32 %v1360, %v1442
        %v1487 = vadd.f32 %v1361, %v1445
        %v1488 = vadd.f32 %v1362, %v1450
        %v1489 = vadd.f32 %v1363, %v1453
        %v1490 = vadd.f32 %v1364, %v1458
        %v1491 = vadd.f32 %v1365, %v1461
        %v1492 = vadd.f32 %v1366, %v1466
        %v1493 = vadd.f32 %v1367, %v1469
        %v1494 = vadd.f32 %v1368, %v1474
        %v1495 = vadd.f32 %v1369, %v1477
        %v1497 = vshrl.u32 %v216, 16
        %v1499 = vrot.slane %v1497, 4
        %v1500 = vshll.u32 %v216, 16
        %v1502 = vrot.slane %v1500, 5
        %v1503 = vor.u32 %v1499, %v1502
        %v1504 = vrot.slane %v1503, 4
        %v1506 = vshll.u32 %v217, 16
        %v1508 = vrot.slane %v1506, 5
        %v1509 = vsel %vm222, %v1504, %v1508
        %v1510 = vshrl.u32 %v217, 16
        %v1512 = vrot.slane %v1510, 4
        %v1513 = vor.u32 %v1512, %v1508
        %v1514 = vrot.slane %v1513, 4
        %v1516 = vshll.u32 %v218, 16
        %v1518 = vrot.slane %v1516, 5
        %v1519 = vsel %vm222, %v1514, %v1518
        %s1520 = scalar_lea.vmem %s1, 14
        %v1521 = vld [vmem:[%s1520] sm:$0x3]
        %v1522 = vunpack.c.l.b16 %v1509
        %v1523 = vunpack.c.l.b16 %v1519
        %v1524 = vpack.c.b16 %v1523, %v1522
        %v1526 = vsel %vm441, %v1524, 0
        %v1529 = vsel %vm466, %v1521, 0
        %1531 = vmatprep.subr.bf16.mxu0 0
        %1532 = vmatpush1.bf16.msra.mxu0 %v1529
        %1533 = vmatprep.subr.bf16.mxu0 0
        %1534 = vmatpush1.bf16.msra.mxu0 0
        %1535 = vmatprep.subr.bf16.mxu0 0
        %1536 = vmatpush1.bf16.msra.mxu0 0
        %1537 = vmatprep.subr.bf16.mxu0 0
        %1538 = vmatpush1.bf16.msra.mxu0 0
        %1539 = vmatprep.subr.bf16.mxu0 0
        %1540 = vmatpush1.bf16.msra.mxu0 0
        %1541 = vmatprep.subr.bf16.mxu0 0
        %1542 = vmatpush1.bf16.msra.mxu0 0
        %1543 = vmatprep.subr.bf16.mxu0 0
        %1544 = vmatpush1.bf16.msra.mxu0 0
        %1545 = vmatprep.subr.bf16.mxu0 0
        %1546 = vmatpush1.bf16.msra.mxu0 0
        %1547 = vmatprep.subr.bf16.mxu0 0
        %1548 = vmatpush1.bf16.msra.mxu0 0
        %1549 = vmatprep.subr.bf16.mxu0 0
        %1550 = vmatpush1.bf16.msra.mxu0 0
        %1551 = vmatprep.subr.bf16.mxu0 0
        %1552 = vmatpush1.bf16.msra.mxu0 0
        %1553 = vmatprep.subr.bf16.mxu0 0
        %1554 = vmatpush1.bf16.msra.mxu0 0
        %1555 = vmatprep.subr.bf16.mxu0 0
        %1556 = vmatpush1.bf16.msra.mxu0 0
        %1557 = vmatprep.subr.bf16.mxu0 0
        %1558 = vmatpush1.bf16.msra.mxu0 0
        %1559 = vmatprep.subr.bf16.mxu0 0
        %1560 = vmatpush1.bf16.msra.mxu0 0
        %1561 = vmatprep.subr.bf16.mxu0 0
        %1562 = vmatpush1.bf16.msra.mxu0 0
        %1563 = vmatprep.mubr.bf16.mxu0 0
        %1564 = vmatmul.mubr.bf16.gmra.mrb[0].mxu0 %v449
        %v1565 = vpop.f32.mrb[0].mxu0
        %v1566 = vadd.f32 0.0, %v1565
        %v1567 = vpop.f32.mrb[0].mxu0
        %v1568 = vpop.f32.mrb[0].mxu0
        %v1569 = vadd.f32 0.0, %v1568
        %v1570 = vpop.f32.mrb[0].mxu0
        %1571 = vmatprep.mubr.bf16.mxu0 0
        %1572 = vmatmul.mubr.bf16.gmra.mrb[0].mxu0 %v452
        %v1573 = vpop.f32.mrb[0].mxu0
        %v1574 = vadd.f32 0.0, %v1573
        %v1575 = vpop.f32.mrb[0].mxu0
        %v1576 = vpop.f32.mrb[0].mxu0
        %v1577 = vadd.f32 0.0, %v1576
        %v1578 = vpop.f32.mrb[0].mxu0
        %1579 = vmatprep.mubr.bf16.mxu0 0
        %1580 = vmatmul.mubr.bf16.gmra.mrb[0].mxu0 %v455
        %v1581 = vpop.f32.mrb[0].mxu0
        %v1582 = vadd.f32 0.0, %v1581
        %v1583 = vpop.f32.mrb[0].mxu0
        %v1584 = vpop.f32.mrb[0].mxu0
        %v1585 = vadd.f32 0.0, %v1584
        %v1586 = vpop.f32.mrb[0].mxu0
        %1587 = vmatprep.mubr.bf16.mxu0 0
        %1588 = vmatmul.mubr.bf16.gmra.mrb[0].mxu0 %v458
        %v1589 = vpop.f32.mrb[0].mxu0
        %v1590 = vadd.f32 0.0, %v1589
        %v1591 = vpop.f32.mrb[0].mxu0
        %v1592 = vpop.f32.mrb[0].mxu0
        %v1593 = vadd.f32 0.0, %v1592
        %v1594 = vpop.f32.mrb[0].mxu0
        %1595 = vmatprep.mubr.bf16.mxu0 0
        %1596 = vmatmul.mubr.bf16.gmra.mrb[0].mxu0 %v461
        %v1597 = vpop.f32.mrb[0].mxu0
        %v1598 = vadd.f32 0.0, %v1597
        %v1599 = vpop.f32.mrb[0].mxu0
        %v1600 = vpop.f32.mrb[0].mxu0
        %v1601 = vadd.f32 0.0, %v1600
        %v1602 = vpop.f32.mrb[0].mxu0
        %1603 = vmatprep.mubr.bf16.mxu0 0
        %1604 = vmatmul.mubr.bf16.gmra.mrb[0].mxu0 %v464
        %v1605 = vpop.f32.mrb[0].mxu0
        %v1606 = vadd.f32 0.0, %v1605
        %v1607 = vpop.f32.mrb[0].mxu0
        %v1608 = vpop.f32.mrb[0].mxu0
        %v1609 = vadd.f32 0.0, %v1608
        %v1610 = vpop.f32.mrb[0].mxu0
        %1611 = vmatprep.mubr.bf16.mxu0 0
        %1612 = vmatmul.mubr.bf16.gmra.mrb[0].mxu0 %v1120
        %v1613 = vpop.f32.mrb[0].mxu0
        %v1614 = vadd.f32 0.0, %v1613
        %v1615 = vpop.f32.mrb[0].mxu0
        %v1616 = vpop.f32.mrb[0].mxu0
        %v1617 = vadd.f32 0.0, %v1616
        %v1618 = vpop.f32.mrb[0].mxu0
        %1619 = vmatprep.mubr.bf16.mxu0 0
        %1620 = vmatmul.mubr.bf16.gmra.mrb[0].mxu0 %v1526
        %v1621 = vpop.f32.mrb[0].mxu0
        %v1622 = vadd.f32 0.0, %v1621
        %v1623 = vpop.f32.mrb[0].mxu0
        %v1624 = vpop.f32.mrb[0].mxu0
        %v1625 = vadd.f32 0.0, %v1624
        %v1626 = vpop.f32.mrb[0].mxu0
        %1627 = vdwg.mxu0
        %v1628 = vadd.f32 %v1480, %v1566
        %v1629 = vadd.f32 %v1481, %v1569
        %v1630 = vadd.f32 %v1482, %v1574
        %v1631 = vadd.f32 %v1483, %v1577
        %v1632 = vadd.f32 %v1484, %v1582
        %v1633 = vadd.f32 %v1485, %v1585
        %v1634 = vadd.f32 %v1486, %v1590
        %v1635 = vadd.f32 %v1487, %v1593
        %v1636 = vadd.f32 %v1488, %v1598
        %v1637 = vadd.f32 %v1489, %v1601
        %v1638 = vadd.f32 %v1490, %v1606
        %v1639 = vadd.f32 %v1491, %v1609
        %v1640 = vadd.f32 %v1492, %v1614
        %v1641 = vadd.f32 %v1493, %v1617
        %v1642 = vadd.f32 %v1494, %v1622
        %v1643 = vadd.f32 %v1495, %v1625
        %v1645 = vrot.slane %v216, 5
        %v1646 = vrot.slane %v1645, 4
        %v1647 = vrot.slane %v217, 5
        %v1648 = vsel %vm741, %v1646, %v1647
        %v1649 = vrot.slane %v1647, 4
        %v1650 = vrot.slane %v218, 5
        %v1651 = vsel %vm741, %v1649, %v1650
        %s1652 = scalar_lea.vmem %s1, 16
        %v1653 = vld [vmem:[%s1652] sm:$0x3]
        %v1654 = vunpack.c.l.b16 %v1648
        %v1655 = vunpack.c.l.b16 %v1651
        %v1656 = vpack.c.b16 %v1655, %v1654
        %v1658 = vsel %vm441, %v1656, 0
        %v1661 = vsel %vm466, %v1653, 0
        %1663 = vmatprep.subr.bf16.mxu0 0
        %1664 = vmatpush1.bf16.msra.mxu0 %v1661
        %1665 = vmatprep.subr.bf16.mxu0 0
        %1666 = vmatpush1.bf16.msra.mxu0 0
        %1667 = vmatprep.subr.bf16.mxu0 0
        %1668 = vmatpush1.bf16.msra.mxu0 0
        %1669 = vmatprep.subr.bf16.mxu0 0
        %1670 = vmatpush1.bf16.msra.mxu0 0
        %1671 = vmatprep.subr.bf16.mxu0 0
        %1672 = vmatpush1.bf16.msra.mxu0 0
        %1673 = vmatprep.subr.bf16.mxu0 0
        %1674 = vmatpush1.bf16.msra.mxu0 0
        %1675 = vmatprep.subr.bf16.mxu0 0
        %1676 = vmatpush1.bf16.msra.mxu0 0
        %1677 = vmatprep.subr.bf16.mxu0 0
        %1678 = vmatpush1.bf16.msra.mxu0 0
        %1679 = vmatprep.subr.bf16.mxu0 0
        %1680 = vmatpush1.bf16.msra.mxu0 0
        %1681 = vmatprep.subr.bf16.mxu0 0
        %1682 = vmatpush1.bf16.msra.mxu0 0
        %1683 = vmatprep.subr.bf16.mxu0 0
        %1684 = vmatpush1.bf16.msra.mxu0 0
        %1685 = vmatprep.subr.bf16.mxu0 0
        %1686 = vmatpush1.bf16.msra.mxu0 0
        %1687 = vmatprep.subr.bf16.mxu0 0
        %1688 = vmatpush1.bf16.msra.mxu0 0
        %1689 = vmatprep.subr.bf16.mxu0 0
        %1690 = vmatpush1.bf16.msra.mxu0 0
        %1691 = vmatprep.subr.bf16.mxu0 0
        %1692 = vmatpush1.bf16.msra.mxu0 0
        %1693 = vmatprep.subr.bf16.mxu0 0
        %1694 = vmatpush1.bf16.msra.mxu0 0
        %1695 = vmatprep.mubr.bf16.mxu0 0
        %1696 = vmatmul.mubr.bf16.gmra.mrb[0].mxu0 %v831
        %v1697 = vpop.f32.mrb[0].mxu0
        %v1698 = vadd.f32 0.0, %v1697
        %v1699 = vpop.f32.mrb[0].mxu0
        %v1700 = vpop.f32.mrb[0].mxu0
        %v1701 = vadd.f32 0.0, %v1700
        %v1702 = vpop.f32.mrb[0].mxu0
        %1703 = vmatprep.mubr.bf16.mxu0 0
        %1704 = vmatmul.mubr.bf16.gmra.mrb[0].mxu0 %v834
        %v1705 = vpop.f32.mrb[0].mxu0
        %v1706 = vadd.f32 0.0, %v1705
        %v1707 = vpop.f32.mrb[0].mxu0
        %v1708 = vpop.f32.mrb[0].mxu0
        %v1709 = vadd.f32 0.0, %v1708
        %v1710 = vpop.f32.mrb[0].mxu0
        %1711 = vmatprep.mubr.bf16.mxu0 0
        %1712 = vmatmul.mubr.bf16.gmra.mrb[0].mxu0 %v837
        %v1713 = vpop.f32.mrb[0].mxu0
        %v1714 = vadd.f32 0.0, %v1713
        %v1715 = vpop.f32.mrb[0].mxu0
        %v1716 = vpop.f32.mrb[0].mxu0
        %v1717 = vadd.f32 0.0, %v1716
        %v1718 = vpop.f32.mrb[0].mxu0
        %1719 = vmatprep.mubr.bf16.mxu0 0
        %1720 = vmatmul.mubr.bf16.gmra.mrb[0].mxu0 %v840
        %v1721 = vpop.f32.mrb[0].mxu0
        %v1722 = vadd.f32 0.0, %v1721
        %v1723 = vpop.f32.mrb[0].mxu0
        %v1724 = vpop.f32.mrb[0].mxu0
        %v1725 = vadd.f32 0.0, %v1724
        %v1726 = vpop.f32.mrb[0].mxu0
        %1727 = vmatprep.mubr.bf16.mxu0 0
        %1728 = vmatmul.mubr.bf16.gmra.mrb[0].mxu0 %v843
        %v1729 = vpop.f32.mrb[0].mxu0
        %v1730 = vadd.f32 0.0, %v1729
        %v1731 = vpop.f32.mrb[0].mxu0
        %v1732 = vpop.f32.mrb[0].mxu0
        %v1733 = vadd.f32 0.0, %v1732
        %v1734 = vpop.f32.mrb[0].mxu0
        %1735 = vmatprep.mubr.bf16.mxu0 0
        %1736 = vmatmul.mubr.bf16.gmra.mrb[0].mxu0 %v846
        %v1737 = vpop.f32.mrb[0].mxu0
        %v1738 = vadd.f32 0.0, %v1737
        %v1739 = vpop.f32.mrb[0].mxu0
        %v1740 = vpop.f32.mrb[0].mxu0
        %v1741 = vadd.f32 0.0, %v1740
        %v1742 = vpop.f32.mrb[0].mxu0
        %1743 = vmatprep.mubr.bf16.mxu0 0
        %1744 = vmatmul.mubr.bf16.gmra.mrb[0].mxu0 %v1252
        %v1745 = vpop.f32.mrb[0].mxu0
        %v1746 = vadd.f32 0.0, %v1745
        %v1747 = vpop.f32.mrb[0].mxu0
        %v1748 = vpop.f32.mrb[0].mxu0
        %v1749 = vadd.f32 0.0, %v1748
        %v1750 = vpop.f32.mrb[0].mxu0
        %1751 = vmatprep.mubr.bf16.mxu0 0
        %1752 = vmatmul.mubr.bf16.gmra.mrb[0].mxu0 %v1658
        %v1753 = vpop.f32.mrb[0].mxu0
        %v1754 = vadd.f32 0.0, %v1753
        %v1755 = vpop.f32.mrb[0].mxu0
        %v1756 = vpop.f32.mrb[0].mxu0
        %v1757 = vadd.f32 0.0, %v1756
        %v1758 = vpop.f32.mrb[0].mxu0
        %1759 = vdwg.mxu0
        %v1760 = vadd.f32 %v1628, %v1698
        %v1761 = vadd.f32 %v1629, %v1701
        %v1762 = vadd.f32 %v1630, %v1706
        %v1763 = vadd.f32 %v1631, %v1709
        %v1764 = vadd.f32 %v1632, %v1714
        %v1765 = vadd.f32 %v1633, %v1717
        %v1766 = vadd.f32 %v1634, %v1722
        %v1767 = vadd.f32 %v1635, %v1725
        %v1768 = vadd.f32 %v1636, %v1730
        %v1769 = vadd.f32 %v1637, %v1733
        %v1770 = vadd.f32 %v1638, %v1738
        %v1771 = vadd.f32 %v1639, %v1741
        %v1772 = vadd.f32 %v1640, %v1746
        %v1773 = vadd.f32 %v1641, %v1749
        %v1774 = vadd.f32 %v1642, %v1754
        %v1775 = vadd.f32 %v1643, %v1757
        %v1776 = vld [vmem:[%s2] sm:$0x1]
        %v1778 = vlaneseq
        %v1779 = vshrl.u32 %v1778, 7
        %v1780 = vsub.s32 0, %v1779
        %v1781 = vrot.slane %v1776, %v1780
        %v1783 = vadd.f32 %v1760, %v1781
        %v1784 = vadd.f32 %v1761, %v1781
        %v1785 = vadd.f32 %v1762, %v1781
        %v1786 = vadd.f32 %v1763, %v1781
        %v1787 = vadd.f32 %v1764, %v1781
        %v1788 = vadd.f32 %v1765, %v1781
        %v1789 = vadd.f32 %v1766, %v1781
        %v1790 = vadd.f32 %v1767, %v1781
        %v1791 = vadd.f32 %v1768, %v1781
        %v1792 = vadd.f32 %v1769, %v1781
        %v1793 = vadd.f32 %v1770, %v1781
        %v1794 = vadd.f32 %v1771, %v1781
        %v1795 = vadd.f32 %v1772, %v1781
        %v1796 = vadd.f32 %v1773, %v1781
        %v1797 = vadd.f32 %v1774, %v1781
        %v1798 = vadd.f32 %v1775, %v1781
        %v1799 = vmax.f32 %v1783, 0.0
        %v1800 = vmax.f32 %v1784, 0.0
        %v1801 = vmax.f32 %v1785, 0.0
        %v1802 = vmax.f32 %v1786, 0.0
        %v1803 = vmax.f32 %v1787, 0.0
        %v1804 = vmax.f32 %v1788, 0.0
        %v1805 = vmax.f32 %v1789, 0.0
        %v1806 = vmax.f32 %v1790, 0.0
        %v1807 = vmax.f32 %v1791, 0.0
        %v1808 = vmax.f32 %v1792, 0.0
        %v1809 = vmax.f32 %v1793, 0.0
        %v1810 = vmax.f32 %v1794, 0.0
        %v1811 = vmax.f32 %v1795, 0.0
        %v1812 = vmax.f32 %v1796, 0.0
        %v1813 = vmax.f32 %v1797, 0.0
        %v1814 = vmax.f32 %v1798, 0.0
        %1815 = vst [vmem:[%s177] sm:$0xff] %v1799
        %1816 = vst [vmem:[%s177 + $0x8] sm:$0xff] %v1800
        %1817 = vst [vmem:[%s177 + $0x10] sm:$0xff] %v1801
        %1818 = vst [vmem:[%s177 + $0x18] sm:$0xff] %v1802
        %1819 = vst [vmem:[%s177 + $0x20] sm:$0xff] %v1803
        %1820 = vst [vmem:[%s177 + $0x28] sm:$0xff] %v1804
        %1821 = vst [vmem:[%s177 + $0x30] sm:$0xff] %v1805
        %1822 = vst [vmem:[%s177 + $0x38] sm:$0xff] %v1806
        %1823 = vst [vmem:[%s177 + $0x40] sm:$0xff] %v1807
        %1824 = vst [vmem:[%s177 + $0x48] sm:$0xff] %v1808
        %1825 = vst [vmem:[%s177 + $0x50] sm:$0xff] %v1809
        %1826 = vst [vmem:[%s177 + $0x58] sm:$0xff] %v1810
        %1827 = vst [vmem:[%s177 + $0x60] sm:$0xff] %v1811
        %1828 = vst [vmem:[%s177 + $0x68] sm:$0xff] %v1812
        %1829 = vst [vmem:[%s177 + $0x70] sm:$0xff] %v1813
        %1830 = vst [vmem:[%s177 + $0x78] sm:$0xff] %v1814
        %s1831 = sand.u32 %s107, 1
        %s1832 = scalar_lea.sflag [#allocation3], %s1831
        %s1833 = sand.u32 %s107, 1
        %s1834 = smul.addr %s1833, 128
        %s1835 = scalar_lea.vmem [#allocation2], %s1834
        // Predicated region
        $region33: #{tpu_custom_call.1} parent=31 // pred_check
          %p1836 = pneg %p117
        $region34: #{tpu_custom_call.1} parent=31 // pred_check_branch
          %1838 = sbr.rel (%p1836) target = $region36
        $region35: #{tpu_custom_call.1} parent=31 // pred_region
          %s1839 = smul.u32 8, %s22
          %s1841 = ssub.s32 2048, 2048
          %1842 = vsyncadd %s1832, %s1841
          %s1843 = smul.addr %s1839, 2
          %s1844 = smul.addr %s21, 32
          %s1845 = sadd.s32 %s1843, %s1844
          %s1846 = smul.addr %s1845, 128
          %s1847 = scalar_lea.hbm %s3, %s1846
          %s1848 = sshll.u32 %s1835, 4
          %s1849 = int_to_ptr.vmem [resolvable:$true] %s1848
          %1854 = dma.vmem_to_hbm [thread:$0]  %s1849, 2048, %s1847, %s1832, 128, 128, 8
        $region36: #{tpu_custom_call.1} parent=31 // pred_fallthru
          _
      $region32: #{tpu_custom_call.1} parent=5 // pred_fallthru
        _
      %p1855 = scmp.le.s32.totalorder 2, %s12
      // Predicated region
      $region37: #{tpu_custom_call.1} parent=5 // pred_check
        %p1856 = pneg %p1855
      $region38: #{tpu_custom_call.1} parent=5 // pred_check_branch
        %1858 = sbr.rel (%p1856) target = $region40
      $region39: #{tpu_custom_call.1} parent=5 // pred_region
        %s1859 = ssub.s32 %s12, 2
        // Predicated region
        $region41: #{tpu_custom_call.1} parent=39 // pred_check
          %p1860 = pneg %p123
        $region42: #{tpu_custom_call.1} parent=39 // pred_check_branch
          %1862 = sbr.rel (%p1860) target = $region44
        $region43: #{tpu_custom_call.1} parent=39 // pred_region
          %s1863 = sand.u32 %s108, 1
          %s1864 = scalar_lea.sflag [#allocation3], %s1863
          %s1865 = sand.u32 %s108, 1
          %s1866 = smul.addr %s1865, 128
          %s1867 = scalar_lea.vmem [#allocation2], %s1866
          %1868 = dma.done %s1864, 2048
        $region44: #{tpu_custom_call.1} parent=39 // pred_fallthru
          _
      $region40: #{tpu_custom_call.1} parent=5 // pred_fallthru
        _
    $region6: #{tpu_custom_call.1} parent=1 // loop_footer
      %s16 = sadd.s32 1, %s12
    $region7: #{tpu_custom_call.1} parent=1 // loop_footer_branch
      %11 = sbr.rel target = $region3
    $region8: #{tpu_custom_call.1} parent=1 // loop_exit
      _
    %1869 = vsyncpa [#allocation3], 1
    %s1870 = scalar_lea.sflag [#allocation3], 1
    %1871 = vsyncpa %s1870, 1

</llo_original>
